<compile_context>
chip_gen: v5e
topology: v5e:2x2
jax: 0.10.0
libtpu: 0.0.40
codegen_flags: <defaults>
</compile_context>

<pallas_src>
import functools

import jax
import jax.numpy as jnp
from jax.experimental import pallas as pl
from jax.experimental.pallas import tpu as pltpu

VAR_EPS = 1e-4  # matches module's self.var_eps


def _guide_kernel(n_layers, e_ref, x_ref, d_ref, w0x_ref, w0l_ref, b0_ref, *rest):
    """One grid step = one tile of cells (all particles folded into sublanes).

    rest = [w_1, b_1, ..., w_{n_layers-1}, b_{n_layers-1},
            w_heads, b_heads, eps_z, z_pack_out]
    """
    n_hidden_refs = 2 * (n_layers - 1)
    hidden_refs = rest[:n_hidden_refs]
    w_heads_ref, b_heads_ref, eps_z_ref = rest[n_hidden_refs:n_hidden_refs + 3]
    z_pack_ref = rest[n_hidden_refs + 3]

    S, T, L = e_ref.shape
    tc = x_ref.shape[0]            # cells in this tile
    H = w0x_ref.shape[1]

    def mm(a, w):
        # MXU matmul; activation cast to the (possibly bf16) weight dtype,
        # accumulation always f32.
        return jnp.dot(a.astype(w.dtype), w, preferred_element_type=jnp.float32)

    def leaky(v):
        return jnp.where(v > 0, v, 0.01 * v)

    # ---- first hidden layer with split weight (no lane-axis concat of [X, D@E]):
    #        h[s] = X_tile @ W0_x + (D_tile @ E[s]) @ W0_lat + b0
    #      reassociated:
    #        EW       = reshape(E, (S*T, L)) @ W0_lat        one MXU push
    #        lat_h[s] = sum_t D_tile[:, t] * EW[s, t, :]     T-term VPU sum (T small)
    xh = mm(x_ref[...], w0x_ref[...])                               # (tc, H)
    ew = mm(e_ref[...].reshape(S * T, L), w0l_ref[...])             # (S*T, H)
    ew = ew.reshape(S, T, H)
    d = d_ref[...]                                                  # (tc, T) f32
    lat_h = d[:, 0:1][None, :, :] * ew[:, 0:1, :]                   # (S, tc, H)
    for t in range(1, T):                                           # unrolled VPU adds
        lat_h = lat_h + d[:, t:t + 1][None, :, :] * ew[:, t:t + 1, :]

    h = lat_h + xh[None, :, :] + b0_ref[...][None, :, :]            # broadcast add
    h = leaky(h).reshape(S * tc, H)                                 # leading-dim reshape

    # ---- remaining hidden layers
    for layer in range(n_layers - 1):
        w_ref = hidden_refs[2 * layer]
        b_ref = hidden_refs[2 * layer + 1]
        h = leaky(mm(h, w_ref[...]) + b_ref[...])

    # ---- fused Gaussian heads: one (H, 2L) matmul, then f32 elementwise
    heads = mm(h, w_heads_ref[...]) + b_heads_ref[...]              # (S*tc, 2L)
    mean = heads[:, :L]
    log_var = heads[:, L:]
    scale = jnp.sqrt(jnp.exp(log_var) + VAR_EPS)
    sample = mean + scale * eps_z_ref[...].reshape(S * tc, L)

    # ---- one lane-dense packed output tile: [mean | scale | sample]
    packed = jnp.concatenate([mean, scale, sample], axis=-1)        # (S*tc, 3L)
    z_pack_ref[...] = packed.reshape(S, tc, 3 * L)


def _pick_tile(n_cells, requested):
    """Largest sublane-aligned divisor of n_cells that is <= requested."""
    t = max(8, min(requested, n_cells))
    t -= t % 8
    while t > 8 and n_cells % t != 0:
        t -= 8
    if t < 8 or n_cells % t != 0:
        t = n_cells    # full-extent block is always legal
    return t


def cpa_vae_normal_guide_forward(params, X, D, eps_E, eps_z,
                                 matmul_dtype=jnp.float32, tile_cells=256):
    """Runs the fused guide kernel.

    params: dict with
      q_E_loc (T,L), q_E_log_scale (T,L),
      hidden: list of (w (in,out), b (1,out)),
      w_mean (H,L), b_mean (1,L), w_logvar (H,L), b_logvar (1,L)
    X: (C, P), D: (C, T), eps_E: (S, T, L), eps_z: (S, C, L)
    """
    S, T, L = eps_E.shape
    C, P = X.shape
    hidden = params["hidden"]
    n_layers = len(hidden)
    H = hidden[0][0].shape[1]

    # ---- q(E) parameters and E sample (tiny (S,T,L) elementwise; XLA glue).
    q_E_loc = params["q_E_loc"]
    q_E_scale = jnp.exp(params["q_E_log_scale"]) + VAR_EPS
    E = q_E_loc[None] + q_E_scale[None] * eps_E                      # (S, T, L) f32
    # NOTE: with matmul_dtype=bf16 the encoder consumes bf16-rounded E inside the
    # kernel's matmuls while the returned E sample stays f32 (documented tradeoff).

    # ---- parameter plumbing (pure glue, outside the kernel).
    w0, b0 = hidden[0]
    assert w0.shape[0] == P + L, "expected non-mean-field encoder weights (P+L, H)"
    wcast = lambda w: w.astype(matmul_dtype)                         # bf16 once, in XLA
    w0_x, w0_lat = wcast(w0[:P]), wcast(w0[P:])                      # split -> no concat
    w_heads = wcast(jnp.concatenate([params["w_mean"], params["w_logvar"]], axis=1))
    b_heads = jnp.concatenate([params["b_mean"], params["b_logvar"]], axis=1)  # f32

    tc = _pick_tile(C, tile_cells)
    num_tiles = C // tc

    resident = lambda shape: pl.BlockSpec(tuple(shape),
                                          lambda i, n=len(shape): (0,) * n)

    inputs = [E, X, D, w0_x, w0_lat, b0]
    in_specs = [resident(E.shape),
                pl.BlockSpec((tc, P), lambda i: (i, 0)),
                pl.BlockSpec((tc, T), lambda i: (i, 0)),
                resident(w0_x.shape), resident(w0_lat.shape), resident(b0.shape)]
    for (w, b) in hidden[1:]:
        inputs += [wcast(w), b]
        in_specs += [resident(w.shape), resident(b.shape)]
    inputs += [w_heads, b_heads, eps_z]
    in_specs += [resident(w_heads.shape), resident(b_heads.shape),
                 pl.BlockSpec((S, tc, L), lambda i: (0, i, 0))]

    out_shape = jax.ShapeDtypeStruct((S, C, 3 * L), jnp.float32)
    out_specs = pl.BlockSpec((S, tc, 3 * L), lambda i: (0, i, 0))

    # Advisory cost estimate for XLA's scheduler.
    flops = int(2 * C * P * H
                + 2 * num_tiles * S * T * L * H
                + 2 * S * C * T * H
                + 2 * S * C * H * H * (n_layers - 1)
                + 2 * S * C * H * 2 * L
                + 8 * S * C * L)
    bytes_accessed = int(sum(int(a.size) * a.dtype.itemsize for a in inputs)
                         + S * C * 3 * L * 4)
    cost = pl.CostEstimate(flops=flops,
                           transcendentals=int(2 * S * C * L),
                           bytes_accessed=bytes_accessed)

    kernel = functools.partial(_guide_kernel, n_layers)
    z_pack = pl.pallas_call(
        kernel,
        out_shape=out_shape,
        grid=(num_tiles,),
        in_specs=in_specs,
        out_specs=out_specs,
        compiler_params=pltpu.CompilerParams(
            # Cell-tile axis is embarrassingly parallel: shards across v7x's 2 TCs,
            # no effect on v5e/v6e.
            dimension_semantics=("parallel",),
            # Explicit budget: resident weights + double-buffered tiles fit well
            # under v7x's 64 MiB physical VMEM.
            vmem_limit_bytes=48 * 1024 * 1024),
        cost_estimate=cost,
    )(*inputs)

    # Pure lane slices on the packed (S, C, 3L) slab (no reshapes needed).
    z_loc = z_pack[..., :L]
    z_scale = z_pack[..., L:2 * L]
    z_sample = z_pack[..., 2 * L:]

    # TODO(synk): for production L, pad L to a multiple of 128 (lane-aligned heads
    # and unmasked z_pack stores); at L=16 the extra HBM traffic is not worth it.
    guide_distributions = {
        "q_E": (q_E_loc, q_E_scale),
        "q_z_basal": (z_loc, z_scale),
    }
    guide_samples = {"E": E, "z_basal": z_sample}
    return guide_distributions, guide_samples


def _reference_forward(params, X, D, eps_E, eps_z):
    """Pure-JAX reference mirroring the PyTorch module."""
    q_E_scale = jnp.exp(params["q_E_log_scale"]) + VAR_EPS
    E = params["q_E_loc"][None] + q_E_scale[None] * eps_E                    # (S,T,L)
    lat = jnp.einsum("ct,stl->scl", D, E)                                    # (S,C,L)
    enc_in = jnp.concatenate(
        [jnp.broadcast_to(X[None], (E.shape[0],) + X.shape), lat], axis=-1)
    h = enc_in
    for (w, b) in params["hidden"]:
        h = h @ w + b
        h = jnp.where(h > 0, h, 0.01 * h)
    mean = h @ params["w_mean"] + params["b_mean"]
    log_var = h @ params["w_logvar"] + params["b_logvar"]
    scale = jnp.sqrt(jnp.exp(log_var) + VAR_EPS)
    return E, mean, scale, mean + scale * eps_z


def _init_params(key, n_phenos, n_treatments, n_latent, n_layers, n_hidden,
                 embedding_loc_init_scale=0.0, embedding_scale_init=1.0):
    """Deterministic synthetic parameter init (shapes match module __init__)."""
    params = {
        "q_E_loc": embedding_loc_init_scale
        * jax.random.normal(jax.random.fold_in(key, 100), (n_treatments, n_latent)),
        "q_E_log_scale": jnp.log(embedding_scale_init)
        * jnp.ones((n_treatments, n_latent), jnp.float32),
    }
    n_input = n_phenos + n_latent  # mean_field_encoder=False
    hidden = []
    d_in = n_input
    for layer in range(n_layers):
        kw = jax.random.fold_in(key, 2 * layer)
        w = 0.1 * jax.random.normal(kw, (d_in, n_hidden), jnp.float32)
        b = jnp.zeros((1, n_hidden), jnp.float32)
        hidden.append((w, b))
        d_in = n_hidden
    params["hidden"] = hidden
    params["w_mean"] = 0.1 * jax.random.normal(
        jax.random.fold_in(key, 200), (n_hidden, n_latent), jnp.float32)
    params["b_mean"] = jnp.zeros((1, n_latent), jnp.float32)
    params["w_logvar"] = 0.1 * jax.random.normal(
        jax.random.fold_in(key, 201), (n_hidden, n_latent), jnp.float32)
    params["b_logvar"] = jnp.zeros((1, n_latent), jnp.float32)
    return params


if __name__ == "__main__":
    # Small shapes consistent with the module's forward; C chosen so the
    # cell-tiled grid has more than one step (exercises pipelining).
    n_particles = 2
    n_cells = 64
    n_phenos = 32
    n_treatments = 4
    n_latent = 16
    n_layers = 2
    n_hidden = 32

    key = jax.random.PRNGKey(0)
    k_x, k_d, k_eE, k_ez, k_p = jax.random.split(key, 5)

    X = jax.random.normal(k_x, (n_cells, n_phenos), jnp.float32)
    D = (jax.random.uniform(k_d, (n_cells, n_treatments)) < 0.3).astype(jnp.float32)
    eps_E = jax.random.normal(k_eE, (n_particles, n_treatments, n_latent), jnp.float32)
    eps_z = jax.random.normal(k_ez, (n_particles, n_cells, n_latent), jnp.float32)

    # TODO(synk): basal_encoder_input_normalization (standardize/log_standardize),
    # the condition_values override path, and mean_field_encoder=True are not
    # implemented in the kernel.
    params = _init_params(k_p, n_phenos, n_treatments, n_latent, n_layers, n_hidden)

    # f32-MXU path (tight correctness check against pure-JAX reference)
    dists, samples = cpa_vae_normal_guide_forward(
        params, X, D, eps_E, eps_z, tile_cells=32)
    jax.block_until_ready((dists, samples))

    E_ref, zloc_ref, zscale_ref, zsamp_ref = _reference_forward(params, X, D, eps_E, eps_z)
    z_loc, z_scale = dists["q_z_basal"]
    assert jnp.allclose(samples["E"], E_ref, atol=1e-5, rtol=1e-5)
    assert jnp.allclose(z_loc, zloc_ref, atol=1e-4, rtol=1e-4)
    assert jnp.allclose(z_scale, zscale_ref, atol=1e-4, rtol=1e-4)
    assert jnp.allclose(samples["z_basal"], zsamp_ref, atol=1e-4, rtol=1e-4)

    # bf16-weight MXU path (recommended on v6e/v7x; elementwise stays f32) — loose check
    dists_bf16, samples_bf16 = cpa_vae_normal_guide_forward(
        params, X, D, eps_E, eps_z, matmul_dtype=jnp.bfloat16, tile_cells=32)
    jax.block_until_ready((dists_bf16, samples_bf16))
    assert jnp.allclose(dists_bf16["q_z_basal"][0], zloc_ref, atol=1e-1, rtol=1e-1)
    assert jnp.allclose(samples_bf16["z_basal"], zsamp_ref, atol=1e-1, rtol=1e-1)

    print("KERNEL_OK")
</pallas_src>

<mosaic_0001>
module attributes {stable_mosaic.version = 11 : i64} {
  func.func @_guide_kernel(%arg0: i32, %arg1: memref<2x4x16xf32, #tpu.memory_space<vmem>>, %arg2: memref<32x32xf32, #tpu.memory_space<vmem>>, %arg3: memref<32x4xf32, #tpu.memory_space<vmem>>, %arg4: memref<32x32xf32, #tpu.memory_space<vmem>>, %arg5: memref<16x32xf32, #tpu.memory_space<vmem>>, %arg6: memref<1x32xf32, #tpu.memory_space<vmem>>, %arg7: memref<32x32xf32, #tpu.memory_space<vmem>>, %arg8: memref<1x32xf32, #tpu.memory_space<vmem>>, %arg9: memref<32x32xf32, #tpu.memory_space<vmem>>, %arg10: memref<1x32xf32, #tpu.memory_space<vmem>>, %arg11: memref<2x32x16xf32, #tpu.memory_space<vmem>>, %arg12: memref<2x32x48xf32, #tpu.memory_space<vmem>>) attributes {dimension_semantics = [#tpu.dimension_semantics<parallel>], iteration_bounds = array<i64: 2>, scalar_prefetch = 0 : i64, scratch_operands = 0 : i64, tpu.core_type = #tpu.core_type<tc>, window_params = [{pipeline_mode = #tpu.pipeline_mode<synchronous>, transform_indices = @transform_0, window_bounds = array<i64: 2, 4, 16>}, {transform_indices = @transform_1, window_bounds = array<i64: 32, 32>}, {transform_indices = @transform_2, window_bounds = array<i64: 32, 4>}, {pipeline_mode = #tpu.pipeline_mode<synchronous>, transform_indices = @transform_3, window_bounds = array<i64: 32, 32>}, {pipeline_mode = #tpu.pipeline_mode<synchronous>, transform_indices = @transform_4, window_bounds = array<i64: 16, 32>}, {pipeline_mode = #tpu.pipeline_mode<synchronous>, transform_indices = @transform_5, window_bounds = array<i64: 1, 32>}, {pipeline_mode = #tpu.pipeline_mode<synchronous>, transform_indices = @transform_6, window_bounds = array<i64: 32, 32>}, {pipeline_mode = #tpu.pipeline_mode<synchronous>, transform_indices = @transform_7, window_bounds = array<i64: 1, 32>}, {pipeline_mode = #tpu.pipeline_mode<synchronous>, transform_indices = @transform_8, window_bounds = array<i64: 32, 32>}, {pipeline_mode = #tpu.pipeline_mode<synchronous>, transform_indices = @transform_9, window_bounds = array<i64: 1, 32>}, {transform_indices = @transform_10, window_bounds = array<i64: 2, 32, 16>}, {transform_indices = @transform_11, window_bounds = array<i64: 2, 32, 48>}]} {
    %c0 = arith.constant 0 : index
    %c0_0 = arith.constant 0 : index
    %0 = vector.load %arg2[%c0, %c0_0] : memref<32x32xf32, #tpu.memory_space<vmem>>, vector<32x32xf32>
    %c0_1 = arith.constant 0 : index
    %c0_2 = arith.constant 0 : index
    %1 = vector.load %arg4[%c0_1, %c0_2] : memref<32x32xf32, #tpu.memory_space<vmem>>, vector<32x32xf32>
    %cst = arith.constant dense<0.000000e+00> : vector<32x32xf32>
    %2 = tpu.matmul %0, %1, %cst {dimension_numbers = #tpu.dot_dimension_numbers<[1], [0], [0], [1], [0, 0, 1, 1], [], []>} : vector<32x32xf32>, vector<32x32xf32>, vector<32x32xf32> -> vector<32x32xf32>
    %c0_3 = arith.constant 0 : index
    %c0_4 = arith.constant 0 : index
    %c0_5 = arith.constant 0 : index
    %3 = vector.load %arg1[%c0_3, %c0_4, %c0_5] : memref<2x4x16xf32, #tpu.memory_space<vmem>>, vector<2x4x16xf32>
    %4 = vector.shape_cast %3 : vector<2x4x16xf32> to vector<8x16xf32>
    %c0_6 = arith.constant 0 : index
    %c0_7 = arith.constant 0 : index
    %5 = vector.load %arg5[%c0_6, %c0_7] : memref<16x32xf32, #tpu.memory_space<vmem>>, vector<16x32xf32>
    %cst_8 = arith.constant dense<0.000000e+00> : vector<8x32xf32>
    %6 = tpu.matmul %4, %5, %cst_8 {dimension_numbers = #tpu.dot_dimension_numbers<[1], [0], [0], [1], [0, 0, 1, 1], [], []>} : vector<8x16xf32>, vector<16x32xf32>, vector<8x32xf32> -> vector<8x32xf32>
    %7 = vector.shape_cast %6 : vector<8x32xf32> to vector<2x4x32xf32>
    %c0_9 = arith.constant 0 : index
    %c0_10 = arith.constant 0 : index
    %8 = vector.load %arg3[%c0_9, %c0_10] : memref<32x4xf32, #tpu.memory_space<vmem>>, vector<32x4xf32>
    %9 = vector.extract_strided_slice %8 {offsets = [0, 0], sizes = [32, 1], strides = [1, 1]} : vector<32x4xf32> to vector<32x1xf32>
    %10 = vector.shape_cast %9 : vector<32x1xf32> to vector<1x32x1xf32>
    %11 = vector.extract_strided_slice %7 {offsets = [0, 0, 0], sizes = [2, 1, 32], strides = [1, 1, 1]} : vector<2x4x32xf32> to vector<2x1x32xf32>
    %12 = vector.broadcast %10 : vector<1x32x1xf32> to vector<2x32x32xf32>
    %13 = vector.broadcast %11 : vector<2x1x32xf32> to vector<2x32x32xf32>
    %14 = arith.mulf %12, %13 : vector<2x32x32xf32>
    %15 = vector.extract_strided_slice %8 {offsets = [0, 1], sizes = [32, 1], strides = [1, 1]} : vector<32x4xf32> to vector<32x1xf32>
    %16 = vector.shape_cast %15 : vector<32x1xf32> to vector<1x32x1xf32>
    %17 = vector.extract_strided_slice %7 {offsets = [0, 1, 0], sizes = [2, 1, 32], strides = [1, 1, 1]} : vector<2x4x32xf32> to vector<2x1x32xf32>
    %18 = vector.broadcast %16 : vector<1x32x1xf32> to vector<2x32x32xf32>
    %19 = vector.broadcast %17 : vector<2x1x32xf32> to vector<2x32x32xf32>
    %20 = arith.mulf %18, %19 : vector<2x32x32xf32>
    %21 = arith.addf %14, %20 : vector<2x32x32xf32>
    %22 = vector.extract_strided_slice %8 {offsets = [0, 2], sizes = [32, 1], strides = [1, 1]} : vector<32x4xf32> to vector<32x1xf32>
    %23 = vector.shape_cast %22 : vector<32x1xf32> to vector<1x32x1xf32>
    %24 = vector.extract_strided_slice %7 {offsets = [0, 2, 0], sizes = [2, 1, 32], strides = [1, 1, 1]} : vector<2x4x32xf32> to vector<2x1x32xf32>
    %25 = vector.broadcast %23 : vector<1x32x1xf32> to vector<2x32x32xf32>
    %26 = vector.broadcast %24 : vector<2x1x32xf32> to vector<2x32x32xf32>
    %27 = arith.mulf %25, %26 : vector<2x32x32xf32>
    %28 = arith.addf %21, %27 : vector<2x32x32xf32>
    %29 = vector.extract_strided_slice %8 {offsets = [0, 3], sizes = [32, 1], strides = [1, 1]} : vector<32x4xf32> to vector<32x1xf32>
    %30 = vector.shape_cast %29 : vector<32x1xf32> to vector<1x32x1xf32>
    %31 = vector.extract_strided_slice %7 {offsets = [0, 3, 0], sizes = [2, 1, 32], strides = [1, 1, 1]} : vector<2x4x32xf32> to vector<2x1x32xf32>
    %32 = vector.broadcast %30 : vector<1x32x1xf32> to vector<2x32x32xf32>
    %33 = vector.broadcast %31 : vector<2x1x32xf32> to vector<2x32x32xf32>
    %34 = arith.mulf %32, %33 : vector<2x32x32xf32>
    %35 = arith.addf %28, %34 : vector<2x32x32xf32>
    %36 = vector.shape_cast %2 : vector<32x32xf32> to vector<1x32x32xf32>
    %37 = vector.broadcast %36 : vector<1x32x32xf32> to vector<2x32x32xf32>
    %38 = arith.addf %35, %37 : vector<2x32x32xf32>
    %c0_11 = arith.constant 0 : index
    %c0_12 = arith.constant 0 : index
    %39 = vector.load %arg6[%c0_11, %c0_12] : memref<1x32xf32, #tpu.memory_space<vmem>>, vector<1x32xf32>
    %40 = vector.shape_cast %39 : vector<1x32xf32> to vector<1x1x32xf32>
    %41 = vector.broadcast %40 : vector<1x1x32xf32> to vector<2x32x32xf32>
    %42 = arith.addf %38, %41 : vector<2x32x32xf32>
    %cst_13 = arith.constant 0.000000e+00 : f32
    %43 = vector.broadcast %cst_13 : f32 to vector<2x32x32xf32>
    %44 = arith.cmpf ogt, %42, %43 : vector<2x32x32xf32>
    %cst_14 = arith.constant 0.00999999977 : f32
    %45 = vector.broadcast %cst_14 : f32 to vector<2x32x32xf32>
    %46 = arith.mulf %45, %42 : vector<2x32x32xf32>
    %47 = arith.select %44, %42, %46 : vector<2x32x32xi1>, vector<2x32x32xf32>
    %48 = vector.shape_cast %47 : vector<2x32x32xf32> to vector<64x32xf32>
    %c0_15 = arith.constant 0 : index
    %c0_16 = arith.constant 0 : index
    %49 = vector.load %arg7[%c0_15, %c0_16] : memref<32x32xf32, #tpu.memory_space<vmem>>, vector<32x32xf32>
    %cst_17 = arith.constant dense<0.000000e+00> : vector<64x32xf32>
    %50 = tpu.matmul %48, %49, %cst_17 {dimension_numbers = #tpu.dot_dimension_numbers<[1], [0], [0], [1], [0, 0, 1, 1], [], []>} : vector<64x32xf32>, vector<32x32xf32>, vector<64x32xf32> -> vector<64x32xf32>
    %c0_18 = arith.constant 0 : index
    %c0_19 = arith.constant 0 : index
    %51 = vector.load %arg8[%c0_18, %c0_19] : memref<1x32xf32, #tpu.memory_space<vmem>>, vector<1x32xf32>
    %52 = vector.broadcast %51 : vector<1x32xf32> to vector<64x32xf32>
    %53 = arith.addf %50, %52 : vector<64x32xf32>
    %cst_20 = arith.constant 0.000000e+00 : f32
    %54 = vector.broadcast %cst_20 : f32 to vector<64x32xf32>
    %55 = arith.cmpf ogt, %53, %54 : vector<64x32xf32>
    %cst_21 = arith.constant 0.00999999977 : f32
    %56 = vector.broadcast %cst_21 : f32 to vector<64x32xf32>
    %57 = arith.mulf %56, %53 : vector<64x32xf32>
    %58 = arith.select %55, %53, %57 : vector<64x32xi1>, vector<64x32xf32>
    %c0_22 = arith.constant 0 : index
    %c0_23 = arith.constant 0 : index
    %59 = vector.load %arg9[%c0_22, %c0_23] : memref<32x32xf32, #tpu.memory_space<vmem>>, vector<32x32xf32>
    %cst_24 = arith.constant dense<0.000000e+00> : vector<64x32xf32>
    %60 = tpu.matmul %58, %59, %cst_24 {dimension_numbers = #tpu.dot_dimension_numbers<[1], [0], [0], [1], [0, 0, 1, 1], [], []>} : vector<64x32xf32>, vector<32x32xf32>, vector<64x32xf32> -> vector<64x32xf32>
    %c0_25 = arith.constant 0 : index
    %c0_26 = arith.constant 0 : index
    %61 = vector.load %arg10[%c0_25, %c0_26] : memref<1x32xf32, #tpu.memory_space<vmem>>, vector<1x32xf32>
    %62 = vector.broadcast %61 : vector<1x32xf32> to vector<64x32xf32>
    %63 = arith.addf %60, %62 : vector<64x32xf32>
    %64 = vector.extract_strided_slice %63 {offsets = [0, 0], sizes = [64, 16], strides = [1, 1]} : vector<64x32xf32> to vector<64x16xf32>
    %65 = vector.extract_strided_slice %63 {offsets = [0, 16], sizes = [64, 16], strides = [1, 1]} : vector<64x32xf32> to vector<64x16xf32>
    %66 = math.exp %65 : vector<64x16xf32>
    %cst_27 = arith.constant 9.99999974E-5 : f32
    %67 = vector.broadcast %cst_27 : f32 to vector<64x16xf32>
    %68 = arith.addf %66, %67 : vector<64x16xf32>
    %69 = math.sqrt %68 : vector<64x16xf32>
    %c0_28 = arith.constant 0 : index
    %c0_29 = arith.constant 0 : index
    %c0_30 = arith.constant 0 : index
    %70 = vector.load %arg11[%c0_28, %c0_29, %c0_30] : memref<2x32x16xf32, #tpu.memory_space<vmem>>, vector<2x32x16xf32>
    %71 = vector.shape_cast %70 : vector<2x32x16xf32> to vector<64x16xf32>
    %72 = arith.mulf %69, %71 : vector<64x16xf32>
    %73 = arith.addf %64, %72 : vector<64x16xf32>
    %74 = tpu.concatenate %64, %69, %73 in 1 : vector<64x16xf32>, vector<64x16xf32>, vector<64x16xf32> -> vector<64x48xf32>
    %75 = vector.shape_cast %74 : vector<64x48xf32> to vector<2x32x48xf32>
    %c0_31 = arith.constant 0 : index
    %c0_32 = arith.constant 0 : index
    %c0_33 = arith.constant 0 : index
    %76 = vector.load %arg12[%c0_31, %c0_32, %c0_33] : memref<2x32x48xf32, #tpu.memory_space<vmem>>, vector<2x32x48xf32>
    tpu.vector_store %arg12[%c0_31, %c0_32, %c0_33], %75 {strides = array<i32>} : memref<2x32x48xf32, #tpu.memory_space<vmem>>, vector<2x32x48xf32>,
    return
  }
  func.func @transform_0(%arg0: i32) -> (i32, i32, i32) {
    %c0_i32 = arith.constant 0 : i32
    %c0_i32_0 = arith.constant 0 : i32
    %c0_i32_1 = arith.constant 0 : i32
    %c0_i32_2 = arith.constant 0 : i32
    return %c0_i32, %c0_i32_0, %c0_i32_1 : i32, i32, i32
  }
  func.func @transform_1(%arg0: i32) -> (i32, i32) {
    %c0_i32 = arith.constant 0 : i32
    %c0_i32_0 = arith.constant 0 : i32
    return %arg0, %c0_i32 : i32, i32
  }
  func.func @transform_2(%arg0: i32) -> (i32, i32) {
    %c0_i32 = arith.constant 0 : i32
    %c0_i32_0 = arith.constant 0 : i32
    return %arg0, %c0_i32 : i32, i32
  }
  func.func @transform_3(%arg0: i32) -> (i32, i32) {
    %c0_i32 = arith.constant 0 : i32
    %c0_i32_0 = arith.constant 0 : i32
    %c0_i32_1 = arith.constant 0 : i32
    return %c0_i32, %c0_i32_0 : i32, i32
  }
  func.func @transform_4(%arg0: i32) -> (i32, i32) {
    %c0_i32 = arith.constant 0 : i32
    %c0_i32_0 = arith.constant 0 : i32
    %c0_i32_1 = arith.constant 0 : i32
    return %c0_i32, %c0_i32_0 : i32, i32
  }
  func.func @transform_5(%arg0: i32) -> (i32, i32) {
    %c0_i32 = arith.constant 0 : i32
    %c0_i32_0 = arith.constant 0 : i32
    %c0_i32_1 = arith.constant 0 : i32
    return %c0_i32, %c0_i32_0 : i32, i32
  }
  func.func @transform_6(%arg0: i32) -> (i32, i32) {
    %c0_i32 = arith.constant 0 : i32
    %c0_i32_0 = arith.constant 0 : i32
    %c0_i32_1 = arith.constant 0 : i32
    return %c0_i32, %c0_i32_0 : i32, i32
  }
  func.func @transform_7(%arg0: i32) -> (i32, i32) {
    %c0_i32 = arith.constant 0 : i32
    %c0_i32_0 = arith.constant 0 : i32
    %c0_i32_1 = arith.constant 0 : i32
    return %c0_i32, %c0_i32_0 : i32, i32
  }
  func.func @transform_8(%arg0: i32) -> (i32, i32) {
    %c0_i32 = arith.constant 0 : i32
    %c0_i32_0 = arith.constant 0 : i32
    %c0_i32_1 = arith.constant 0 : i32
    return %c0_i32, %c0_i32_0 : i32, i32
  }
  func.func @transform_9(%arg0: i32) -> (i32, i32) {
    %c0_i32 = arith.constant 0 : i32
    %c0_i32_0 = arith.constant 0 : i32
    %c0_i32_1 = arith.constant 0 : i32
    return %c0_i32, %c0_i32_0 : i32, i32
  }
  func.func @transform_10(%arg0: i32) -> (i32, i32, i32) {
    %c0_i32 = arith.constant 0 : i32
    %c0_i32_0 = arith.constant 0 : i32
    %c0_i32_1 = arith.constant 0 : i32
    return %c0_i32, %arg0, %c0_i32_0 : i32, i32, i32
  }
  func.func @transform_11(%arg0: i32) -> (i32, i32, i32) {
    %c0_i32 = arith.constant 0 : i32
    %c0_i32_0 = arith.constant 0 : i32
    %c0_i32_1 = arith.constant 0 : i32
    return %c0_i32, %arg0, %c0_i32_0 : i32, i32, i32
  }
}

</mosaic_0001>

<llo_original>
// kernel: tpu_custom_call.1
$region0: #{tpu_custom_call.1}
  #allocation0 [shape = 'u32[]', space=smem, size = 0x4, offset = 0x4, fixed_abs, tag = 'smem constant byte address 0x4 - core index']
  #allocation1 [shape = 'u32[72,128]{1,0:T(1,128)}', space=vmem, size = 0x9000, scoped, tag = 'internal scratch']
  %s0 = inlined_call_operand.vmem [shape: f32[2,4,16], index: 0, kind: input, shape index: {}]
  %s1 = inlined_call_operand.vmem [shape: f32[64,32], index: 1, kind: input, shape index: {}]
  %s2 = inlined_call_operand.vmem [shape: f32[64,4], index: 2, kind: input, shape index: {}]
  %s3 = inlined_call_operand.vmem [shape: f32[32,32], index: 3, kind: input, shape index: {}]
  %s4 = inlined_call_operand.vmem [shape: f32[16,32], index: 4, kind: input, shape index: {}]
  %s5 = inlined_call_operand.vmem [shape: f32[1,32], index: 5, kind: input, shape index: {}]
  %s6 = inlined_call_operand.vmem [shape: f32[32,32], index: 6, kind: input, shape index: {}]
  %s7 = inlined_call_operand.vmem [shape: f32[1,32], index: 7, kind: input, shape index: {}]
  %s8 = inlined_call_operand.vmem [shape: f32[32,32], index: 8, kind: input, shape index: {}]
  %s9 = inlined_call_operand.vmem [shape: f32[1,32], index: 9, kind: input, shape index: {}]
  %s10 = inlined_call_operand.vmem [shape: f32[2,64,16], index: 10, kind: input, shape index: {}]
  %s11 = inlined_call_operand.vmem [shape: f32[2,64,48], index: 11, kind: output, shape index: {}]
  %s12 = sld [smem:[#allocation0]]
  $region149: #{tpu_custom_call.1} parent=0
    _
  %s14 = ssub.s32 1, %s12
  %s15 = scalar_select 0, %s14, %s12
  $region1: #{tpu_custom_call.1} parent=0
    #allocation2 [shape = 'u8[65536]{0}', space=vmem, size = 0x10000, scoped, tag = 'input window, operand 10']
    #allocation3 [shape = 'u8[65536]{0}', space=vmem, size = 0x10000, scoped, tag = 'output window, operand 0']
    loop: start=0, step=1, limit=4
    $region2: #{tpu_custom_call.1} parent=1 // loop_pre_header
      _
    $region3: #{tpu_custom_call.1} parent=1 // loop_header
      %s17 = sphi 0, %s21
      %p18 = scmp.ge.s32.totalorder %s17, 4
      %s25 = sphi 0, %s25
      %s27 = sphi 0, %s25
      %s28 = sphi 0, %s27
      %s42 = sphi 0, %s28
      %s48 = sphi 0, %s50
      %s51 = sphi 0, %s48
      %s52 = sphi 0, %s51
      %s68 = sphi 0, %s52
      %s74 = sphi 0, %s76
      %s77 = sphi 0, %s74
      %s78 = sphi 0, %s77
      %s94 = sphi 0, %s78
      %s98 = sphi 0, %s98
      %s100 = sphi 0, %s98
      %s101 = sphi 0, %s100
      %s115 = sphi 0, %s101
      %s119 = sphi 0, %s119
      %s121 = sphi 0, %s119
      %s122 = sphi 0, %s121
      %s136 = sphi 0, %s122
      %s140 = sphi 0, %s140
      %s142 = sphi 0, %s140
      %s143 = sphi 0, %s142
      %s157 = sphi 0, %s143
      %s161 = sphi 0, %s161
      %s163 = sphi 0, %s161
      %s164 = sphi 0, %s163
      %s178 = sphi 0, %s164
      %s182 = sphi 0, %s182
      %s184 = sphi 0, %s182
      %s185 = sphi 0, %s184
      %s199 = sphi 0, %s185
      %s203 = sphi 0, %s203
      %s205 = sphi 0, %s203
      %s206 = sphi 0, %s205
      %s220 = sphi 0, %s206
      %s224 = sphi 0, %s224
      %s226 = sphi 0, %s224
      %s227 = sphi 0, %s226
      %s241 = sphi 0, %s227
      %s247 = sphi 0, %s249
      %s250 = sphi 0, %s247
      %s251 = sphi 0, %s250
      %s267 = sphi 0, %s251
      %s273 = sphi 0, %s275
      %s276 = sphi 0, %s273
      %s277 = sphi 0, %s276
      %s293 = sphi 0, %s277
    $region4: #{tpu_custom_call.1} parent=1 // loop_header_branch
      %20 = sbr.rel (%p18) target = $region8
    $region5: #{tpu_custom_call.1} parent=1 // loop_body
      %s22 = ssub.s32 %s17, 1
      %s23 = ssub.s32 %s17, 2
      %s24 = sadd.s32 %s17, 1
      %s26 = sadd.s32 %s25, 1
      %p29 = scmp.eq.s32.totalorder %s17, 1
      %p30 = scmp.ne.s32.totalorder %s25, %s27
      %p31 = scmp.eq.s32.totalorder %s17, 0
      %p32 = por %p30, %p31
      %p33 = scmp.ne.s32.totalorder %s25, %s27
      %p34 = scmp.eq.s32.totalorder %s22, 1
      %p35 = por %p33, %p34
      %p36 = scmp.ne.s32.totalorder %s27, %s28
      %p37 = scmp.eq.s32.totalorder %s22, 0
      %p38 = por %p36, %p37
      %p39 = scmp.ne.s32.totalorder %s27, %s28
      %p40 = scmp.eq.s32.totalorder %s23, 1
      %p41 = por %p39, %p40
      %p43 = scmp.ne.s32.totalorder %s28, %s42
      %p44 = scmp.eq.s32.totalorder %s23, 0
      %p45 = por %p43, %p44
      %s46 = ssub.s32 %s17, %s24
      %p47 = scmp.eq.s32.totalorder %s46, 0
      %s49 = sadd.s32 %s48, 1
      %s50 = scalar_select %p47, %s48, %s49
      %p53 = pneg %p47
      %p54 = scmp.eq.s32.totalorder %s17, 1
      %p55 = por %p53, %p54
      %p56 = scmp.ne.s32.totalorder %s48, %s51
      %p57 = scmp.eq.s32.totalorder %s17, 0
      %p58 = por %p56, %p57
      %p59 = scmp.ne.s32.totalorder %s48, %s51
      %p60 = scmp.eq.s32.totalorder %s22, 1
      %p61 = por %p59, %p60
      %p62 = scmp.ne.s32.totalorder %s51, %s52
      %p63 = scmp.eq.s32.totalorder %s22, 0
      %p64 = por %p62, %p63
      %p65 = scmp.ne.s32.totalorder %s51, %s52
      %p66 = scmp.eq.s32.totalorder %s23, 1
      %p67 = por %p65, %p66
      %p69 = scmp.ne.s32.totalorder %s52, %s68
      %p70 = scmp.eq.s32.totalorder %s23, 0
      %p71 = por %p69, %p70
      %s72 = ssub.s32 %s17, %s24
      %p73 = scmp.eq.s32.totalorder %s72, 0
      %s75 = sadd.s32 %s74, 1
      %s76 = scalar_select %p73, %s74, %s75
      %p79 = pneg %p73
      %p80 = scmp.eq.s32.totalorder %s17, 1
      %p81 = por %p79, %p80
      %p82 = scmp.ne.s32.totalorder %s74, %s77
      %p83 = scmp.eq.s32.totalorder %s17, 0
      %p84 = por %p82, %p83
      %p85 = scmp.ne.s32.totalorder %s74, %s77
      %p86 = scmp.eq.s32.totalorder %s22, 1
      %p87 = por %p85, %p86
      %p88 = scmp.ne.s32.totalorder %s77, %s78
      %p89 = scmp.eq.s32.totalorder %s22, 0
      %p90 = por %p88, %p89
      %p91 = scmp.ne.s32.totalorder %s77, %s78
      %p92 = scmp.eq.s32.totalorder %s23, 1
      %p93 = por %p91, %p92
      %p95 = scmp.ne.s32.totalorder %s78, %s94
      %p96 = scmp.eq.s32.totalorder %s23, 0
      %p97 = por %p95, %p96
      %s99 = sadd.s32 %s98, 1
      %p102 = scmp.eq.s32.totalorder %s17, 1
      %p103 = scmp.ne.s32.totalorder %s98, %s100
      %p104 = scmp.eq.s32.totalorder %s17, 0
      %p105 = por %p103, %p104
      %p106 = scmp.ne.s32.totalorder %s98, %s100
      %p107 = scmp.eq.s32.totalorder %s22, 1
      %p108 = por %p106, %p107
      %p109 = scmp.ne.s32.totalorder %s100, %s101
      %p110 = scmp.eq.s32.totalorder %s22, 0
      %p111 = por %p109, %p110
      %p112 = scmp.ne.s32.totalorder %s100, %s101
      %p113 = scmp.eq.s32.totalorder %s23, 1
      %p114 = por %p112, %p113
      %p116 = scmp.ne.s32.totalorder %s101, %s115
      %p117 = scmp.eq.s32.totalorder %s23, 0
      %p118 = por %p116, %p117
      %s120 = sadd.s32 %s119, 1
      %p123 = scmp.eq.s32.totalorder %s17, 1
      %p124 = scmp.ne.s32.totalorder %s119, %s121
      %p125 = scmp.eq.s32.totalorder %s17, 0
      %p126 = por %p124, %p125
      %p127 = scmp.ne.s32.totalorder %s119, %s121
      %p128 = scmp.eq.s32.totalorder %s22, 1
      %p129 = por %p127, %p128
      %p130 = scmp.ne.s32.totalorder %s121, %s122
      %p131 = scmp.eq.s32.totalorder %s22, 0
      %p132 = por %p130, %p131
      %p133 = scmp.ne.s32.totalorder %s121, %s122
      %p134 = scmp.eq.s32.totalorder %s23, 1
      %p135 = por %p133, %p134
      %p137 = scmp.ne.s32.totalorder %s122, %s136
      %p138 = scmp.eq.s32.totalorder %s23, 0
      %p139 = por %p137, %p138
      %s141 = sadd.s32 %s140, 1
      %p144 = scmp.eq.s32.totalorder %s17, 1
      %p145 = scmp.ne.s32.totalorder %s140, %s142
      %p146 = scmp.eq.s32.totalorder %s17, 0
      %p147 = por %p145, %p146
      %p148 = scmp.ne.s32.totalorder %s140, %s142
      %p149 = scmp.eq.s32.totalorder %s22, 1
      %p150 = por %p148, %p149
      %p151 = scmp.ne.s32.totalorder %s142, %s143
      %p152 = scmp.eq.s32.totalorder %s22, 0
      %p153 = por %p151, %p152
      %p154 = scmp.ne.s32.totalorder %s142, %s143
      %p155 = scmp.eq.s32.totalorder %s23, 1
      %p156 = por %p154, %p155
      %p158 = scmp.ne.s32.totalorder %s143, %s157
      %p159 = scmp.eq.s32.totalorder %s23, 0
      %p160 = por %p158, %p159
      %s162 = sadd.s32 %s161, 1
      %p165 = scmp.eq.s32.totalorder %s17, 1
      %p166 = scmp.ne.s32.totalorder %s161, %s163
      %p167 = scmp.eq.s32.totalorder %s17, 0
      %p168 = por %p166, %p167
      %p169 = scmp.ne.s32.totalorder %s161, %s163
      %p170 = scmp.eq.s32.totalorder %s22, 1
      %p171 = por %p169, %p170
      %p172 = scmp.ne.s32.totalorder %s163, %s164
      %p173 = scmp.eq.s32.totalorder %s22, 0
      %p174 = por %p172, %p173
      %p175 = scmp.ne.s32.totalorder %s163, %s164
      %p176 = scmp.eq.s32.totalorder %s23, 1
      %p177 = por %p175, %p176
      %p179 = scmp.ne.s32.totalorder %s164, %s178
      %p180 = scmp.eq.s32.totalorder %s23, 0
      %p181 = por %p179, %p180
      %s183 = sadd.s32 %s182, 1
      %p186 = scmp.eq.s32.totalorder %s17, 1
      %p187 = scmp.ne.s32.totalorder %s182, %s184
      %p188 = scmp.eq.s32.totalorder %s17, 0
      %p189 = por %p187, %p188
      %p190 = scmp.ne.s32.totalorder %s182, %s184
      %p191 = scmp.eq.s32.totalorder %s22, 1
      %p192 = por %p190, %p191
      %p193 = scmp.ne.s32.totalorder %s184, %s185
      %p194 = scmp.eq.s32.totalorder %s22, 0
      %p195 = por %p193, %p194
      %p196 = scmp.ne.s32.totalorder %s184, %s185
      %p197 = scmp.eq.s32.totalorder %s23, 1
      %p198 = por %p196, %p197
      %p200 = scmp.ne.s32.totalorder %s185, %s199
      %p201 = scmp.eq.s32.totalorder %s23, 0
      %p202 = por %p200, %p201
      %s204 = sadd.s32 %s203, 1
      %p207 = scmp.eq.s32.totalorder %s17, 1
      %p208 = scmp.ne.s32.totalorder %s203, %s205
      %p209 = scmp.eq.s32.totalorder %s17, 0
      %p210 = por %p208, %p209
      %p211 = scmp.ne.s32.totalorder %s203, %s205
      %p212 = scmp.eq.s32.totalorder %s22, 1
      %p213 = por %p211, %p212
      %p214 = scmp.ne.s32.totalorder %s205, %s206
      %p215 = scmp.eq.s32.totalorder %s22, 0
      %p216 = por %p214, %p215
      %p217 = scmp.ne.s32.totalorder %s205, %s206
      %p218 = scmp.eq.s32.totalorder %s23, 1
      %p219 = por %p217, %p218
      %p221 = scmp.ne.s32.totalorder %s206, %s220
      %p222 = scmp.eq.s32.totalorder %s23, 0
      %p223 = por %p221, %p222
      %s225 = sadd.s32 %s224, 1
      %p228 = scmp.eq.s32.totalorder %s17, 1
      %p229 = scmp.ne.s32.totalorder %s224, %s226
      %p230 = scmp.eq.s32.totalorder %s17, 0
      %p231 = por %p229, %p230
      %p232 = scmp.ne.s32.totalorder %s224, %s226
      %p233 = scmp.eq.s32.totalorder %s22, 1
      %p234 = por %p232, %p233
      %p235 = scmp.ne.s32.totalorder %s226, %s227
      %p236 = scmp.eq.s32.totalorder %s22, 0
      %p237 = por %p235, %p236
      %p238 = scmp.ne.s32.totalorder %s226, %s227
      %p239 = scmp.eq.s32.totalorder %s23, 1
      %p240 = por %p238, %p239
      %p242 = scmp.ne.s32.totalorder %s227, %s241
      %p243 = scmp.eq.s32.totalorder %s23, 0
      %p244 = por %p242, %p243
      %s245 = ssub.s32 %s17, %s24
      %p246 = scmp.eq.s32.totalorder %s245, 0
      %s248 = sadd.s32 %s247, 1
      %s249 = scalar_select %p246, %s247, %s248
      %p252 = pneg %p246
      %p253 = scmp.eq.s32.totalorder %s17, 1
      %p254 = por %p252, %p253
      %p255 = scmp.ne.s32.totalorder %s247, %s250
      %p256 = scmp.eq.s32.totalorder %s17, 0
      %p257 = por %p255, %p256
      %p258 = scmp.ne.s32.totalorder %s247, %s250
      %p259 = scmp.eq.s32.totalorder %s22, 1
      %p260 = por %p258, %p259
      %p261 = scmp.ne.s32.totalorder %s250, %s251
      %p262 = scmp.eq.s32.totalorder %s22, 0
      %p263 = por %p261, %p262
      %p264 = scmp.ne.s32.totalorder %s250, %s251
      %p265 = scmp.eq.s32.totalorder %s23, 1
      %p266 = por %p264, %p265
      %p268 = scmp.ne.s32.totalorder %s251, %s267
      %p269 = scmp.eq.s32.totalorder %s23, 0
      %p270 = por %p268, %p269
      %s271 = ssub.s32 %s17, %s24
      %p272 = scmp.eq.s32.totalorder %s271, 0
      %s274 = sadd.s32 %s273, 1
      %s275 = scalar_select %p272, %s273, %s274
      %p278 = pneg %p272
      %p279 = scmp.eq.s32.totalorder %s17, 1
      %p280 = por %p278, %p279
      %p281 = scmp.ne.s32.totalorder %s273, %s276
      %p282 = scmp.eq.s32.totalorder %s17, 0
      %p283 = por %p281, %p282
      %p284 = scmp.ne.s32.totalorder %s273, %s276
      %p285 = scmp.eq.s32.totalorder %s22, 1
      %p286 = por %p284, %p285
      %p287 = scmp.ne.s32.totalorder %s276, %s277
      %p288 = scmp.eq.s32.totalorder %s22, 0
      %p289 = por %p287, %p288
      %p290 = scmp.ne.s32.totalorder %s276, %s277
      %p291 = scmp.eq.s32.totalorder %s23, 1
      %p292 = por %p290, %p291
      %p294 = scmp.ne.s32.totalorder %s277, %s293
      %p295 = scmp.eq.s32.totalorder %s23, 0
      %p296 = por %p294, %p295
      %p297 = scmp.le.s32.totalorder 1, %s17
      %p298 = scmp.lt.s32.totalorder %s17, 3
      %p299 = pnand %p297, %p298
      %p300 = pneg %p299
      // Predicated region
      $region9: #{tpu_custom_call.1} parent=5 // pred_check
        _
      $region10: #{tpu_custom_call.1} parent=5 // pred_check_branch
        %302 = sbr.rel (%p299) target = $region12
      $region11: #{tpu_custom_call.1} parent=5 // pred_region
        %s303 = ssub.s32 %s17, 1
        // Predicated region
        $region13: #{tpu_custom_call.1} parent=11 // pred_check
          %p304 = pneg %p38
        $region14: #{tpu_custom_call.1} parent=11 // pred_check_branch
          %306 = sbr.rel (%p304) target = $region16
        $region15: #{tpu_custom_call.1} parent=11 // pred_region
          _
        $region16: #{tpu_custom_call.1} parent=11 // pred_fallthru
          _
        // Predicated region
        $region17: #{tpu_custom_call.1} parent=11 // pred_check
          %p307 = pneg %p111
        $region18: #{tpu_custom_call.1} parent=11 // pred_check_branch
          %309 = sbr.rel (%p307) target = $region20
        $region19: #{tpu_custom_call.1} parent=11 // pred_region
          _
        $region20: #{tpu_custom_call.1} parent=11 // pred_fallthru
          _
        // Predicated region
        $region21: #{tpu_custom_call.1} parent=11 // pred_check
          %p310 = pneg %p132
        $region22: #{tpu_custom_call.1} parent=11 // pred_check_branch
          %312 = sbr.rel (%p310) target = $region24
        $region23: #{tpu_custom_call.1} parent=11 // pred_region
          _
        $region24: #{tpu_custom_call.1} parent=11 // pred_fallthru
          _
        // Predicated region
        $region25: #{tpu_custom_call.1} parent=11 // pred_check
          %p313 = pneg %p153
        $region26: #{tpu_custom_call.1} parent=11 // pred_check_branch
          %315 = sbr.rel (%p313) target = $region28
        $region27: #{tpu_custom_call.1} parent=11 // pred_region
          _
        $region28: #{tpu_custom_call.1} parent=11 // pred_fallthru
          _
        // Predicated region
        $region29: #{tpu_custom_call.1} parent=11 // pred_check
          %p316 = pneg %p174
        $region30: #{tpu_custom_call.1} parent=11 // pred_check_branch
          %318 = sbr.rel (%p316) target = $region32
        $region31: #{tpu_custom_call.1} parent=11 // pred_region
          _
        $region32: #{tpu_custom_call.1} parent=11 // pred_fallthru
          _
        // Predicated region
        $region33: #{tpu_custom_call.1} parent=11 // pred_check
          %p319 = pneg %p195
        $region34: #{tpu_custom_call.1} parent=11 // pred_check_branch
          %321 = sbr.rel (%p319) target = $region36
        $region35: #{tpu_custom_call.1} parent=11 // pred_region
          _
        $region36: #{tpu_custom_call.1} parent=11 // pred_fallthru
          _
        // Predicated region
        $region37: #{tpu_custom_call.1} parent=11 // pred_check
          %p322 = pneg %p216
        $region38: #{tpu_custom_call.1} parent=11 // pred_check_branch
          %324 = sbr.rel (%p322) target = $region40
        $region39: #{tpu_custom_call.1} parent=11 // pred_region
          _
        $region40: #{tpu_custom_call.1} parent=11 // pred_fallthru
          _
        // Predicated region
        $region41: #{tpu_custom_call.1} parent=11 // pred_check
          %p325 = pneg %p237
        $region42: #{tpu_custom_call.1} parent=11 // pred_check_branch
          %327 = sbr.rel (%p325) target = $region44
        $region43: #{tpu_custom_call.1} parent=11 // pred_region
          _
        $region44: #{tpu_custom_call.1} parent=11 // pred_fallthru
          _
      $region12: #{tpu_custom_call.1} parent=5 // pred_fallthru
        _
      %p328 = scmp.lt.s32.totalorder %s17, 2
      // Predicated region
      $region45: #{tpu_custom_call.1} parent=5 // pred_check
        %p329 = pneg %p328
      $region46: #{tpu_custom_call.1} parent=5 // pred_check_branch
        %331 = sbr.rel (%p329) target = $region48
      $region47: #{tpu_custom_call.1} parent=5 // pred_region
        // Predicated region
        $region49: #{tpu_custom_call.1} parent=47 // pred_check
          %p332 = pneg %p58
        $region50: #{tpu_custom_call.1} parent=47 // pred_check_branch
          %334 = sbr.rel (%p332) target = $region52
        $region51: #{tpu_custom_call.1} parent=47 // pred_region
          %s335 = smul.u32 4, %s17
          %p336 = scmp.lt.s32.totalorder %s335, 7
          %s337 = scalar_select %p336, %s335, 7
          %s338 = smul.addr %s337, 8
          %s339 = scalar_lea.vmem %s1, %s338
          %s340 = smul.u32 4, %s17
        $region52: #{tpu_custom_call.1} parent=47 // pred_fallthru
          _
        // Predicated region
        $region53: #{tpu_custom_call.1} parent=47 // pred_check
          %p341 = pneg %p84
        $region54: #{tpu_custom_call.1} parent=47 // pred_check_branch
          %343 = sbr.rel (%p341) target = $region56
        $region55: #{tpu_custom_call.1} parent=47 // pred_region
          %s344 = smul.u32 4, %s17
          %p345 = scmp.lt.s32.totalorder %s344, 7
          %s346 = scalar_select %p345, %s344, 7
          %s347 = smul.addr %s346, 8
          %s348 = scalar_lea.vmem %s2, %s347
          %s349 = smul.u32 4, %s17
        $region56: #{tpu_custom_call.1} parent=47 // pred_fallthru
          _
        // Predicated region
        $region57: #{tpu_custom_call.1} parent=47 // pred_check
          %p350 = pneg %p257
        $region58: #{tpu_custom_call.1} parent=47 // pred_check_branch
          %352 = sbr.rel (%p350) target = $region60
        $region59: #{tpu_custom_call.1} parent=47 // pred_region
          %s353 = sand.u32 %s247, 1
          %s354 = sand.u32 %s247, 1
          %s355 = smul.addr %s354, 64
          %s356 = scalar_lea.vmem [#allocation2], %s355
          %s357 = smul.u32 4, %s17
          %s358 = smul.addr %s357, 8
          %s359 = scalar_lea.vmem %s10, %s358
          // Predicated region
          $region61: #{tpu_custom_call.1} parent=59 // pred_check
            _
          $region62: #{tpu_custom_call.1} parent=59 // pred_check_branch
            %361 = sbr.rel (0) target = $region64
          $region63: #{tpu_custom_call.1} parent=59 // pred_region
            // Predicated region
            $region65: #{tpu_custom_call.1} parent=63 // pred_check
              _
            $region66: #{tpu_custom_call.1} parent=63 // pred_check_branch
              %363 = sbr.rel (0) target = $region68
            $region67: #{tpu_custom_call.1} parent=63 // pred_region
              // Predicated region
              $region80: #{tpu_custom_call.1} parent=67 // pred_check
                _
              $region81: #{tpu_custom_call.1} parent=67 // pred_check_branch
                %393 = sbr.rel (0) target = $region83
              $region82: #{tpu_custom_call.1} parent=67 // pred_region
                loop: start=0, step=1, limit=1
                $region84: #{tpu_custom_call.1} parent=82 // loop_pre_header
                  _
                $region85: #{tpu_custom_call.1} parent=82 // loop_header
                  %s395 = sphi 0, %s399
                  %p396 = scmp.ge.s32.totalorder %s395, 1
                  %s400 = sphi %s359, %s359
                  %s401 = sphi %s356, %s356
                $region86: #{tpu_custom_call.1} parent=82 // loop_header_branch
                  %398 = sbr.rel (%p396) target = $region90
                $region87: #{tpu_custom_call.1} parent=82 // loop_body
                  %v402 = vld [vmem:[%s400] sm:$0xff]
                  %403 = vst [vmem:[%s401] sm:$0xff] %v402
                  %v404 = vld [vmem:[%s400 + $0x8] sm:$0xff]
                  %405 = vst [vmem:[%s401 + $0x8] sm:$0xff] %v404
                  %v406 = vld [vmem:[%s400 + $0x10] sm:$0xff]
                  %407 = vst [vmem:[%s401 + $0x10] sm:$0xff] %v406
                  %v408 = vld [vmem:[%s400 + $0x18] sm:$0xff]
                  %409 = vst [vmem:[%s401 + $0x18] sm:$0xff] %v408
                  %v410 = vld [vmem:[%s400 + $0x40] sm:$0xff]
                  %411 = vst [vmem:[%s401 + $0x20] sm:$0xff] %v410
                  %v412 = vld [vmem:[%s400 + $0x48] sm:$0xff]
                  %413 = vst [vmem:[%s401 + $0x28] sm:$0xff] %v412
                  %v414 = vld [vmem:[%s400 + $0x50] sm:$0xff]
                  %415 = vst [vmem:[%s401 + $0x30] sm:$0xff] %v414
                  %v416 = vld [vmem:[%s400 + $0x58] sm:$0xff]
                  %417 = vst [vmem:[%s401 + $0x38] sm:$0xff] %v416
                $region88: #{tpu_custom_call.1} parent=82 // loop_footer
                  %s399 = sadd.s32 1, %s395
                $region89: #{tpu_custom_call.1} parent=82 // loop_footer_branch
                  %394 = sbr.rel target = $region85
                $region90: #{tpu_custom_call.1} parent=82 // loop_exit
                  _
              $region83: #{tpu_custom_call.1} parent=67 // pred_fallthru
                _
              // Predicated region
              $region91: #{tpu_custom_call.1} parent=67 // pred_check
                _
              $region92: #{tpu_custom_call.1} parent=67 // pred_check_branch
                %419 = sbr.rel target = $region94
              $region93: #{tpu_custom_call.1} parent=67 // pred_region
                _
              $region94: #{tpu_custom_call.1} parent=67 // pred_fallthru
                _
            $region68: #{tpu_custom_call.1} parent=63 // pred_fallthru
              _
            // Predicated region
            $region69: #{tpu_custom_call.1} parent=63 // pred_check
              _
            $region70: #{tpu_custom_call.1} parent=63 // pred_check_branch
              %365 = sbr.rel target = $region72
            $region71: #{tpu_custom_call.1} parent=63 // pred_region
              %s367 = ssub.s32 256, 1
              loop: start=0, step=1, limit=1
              $region73: #{tpu_custom_call.1} parent=71 // loop_pre_header
                _
              $region74: #{tpu_custom_call.1} parent=71 // loop_header
                %s369 = sphi 0, %s373
                %p370 = scmp.ge.s32.totalorder %s369, 1
                %s374 = sphi %s359, %s359
                %s375 = sphi %s356, %s356
              $region75: #{tpu_custom_call.1} parent=71 // loop_header_branch
                %372 = sbr.rel (%p370) target = $region79
              $region76: #{tpu_custom_call.1} parent=71 // loop_body
                %v376 = vld [vmem:[%s374] sm:%s367]
                %377 = vst [vmem:[%s375] sm:%s367] %v376
                %v378 = vld [vmem:[%s374 + $0x8] sm:%s367]
                %379 = vst [vmem:[%s375 + $0x8] sm:%s367] %v378
                %v380 = vld [vmem:[%s374 + $0x10] sm:%s367]
                %381 = vst [vmem:[%s375 + $0x10] sm:%s367] %v380
                %v382 = vld [vmem:[%s374 + $0x18] sm:%s367]
                %383 = vst [vmem:[%s375 + $0x18] sm:%s367] %v382
                %v384 = vld [vmem:[%s374 + $0x40] sm:%s367]
                %385 = vst [vmem:[%s375 + $0x20] sm:%s367] %v384
                %v386 = vld [vmem:[%s374 + $0x48] sm:%s367]
                %387 = vst [vmem:[%s375 + $0x28] sm:%s367] %v386
                %v388 = vld [vmem:[%s374 + $0x50] sm:%s367]
                %389 = vst [vmem:[%s375 + $0x30] sm:%s367] %v388
                %v390 = vld [vmem:[%s374 + $0x58] sm:%s367]
                %391 = vst [vmem:[%s375 + $0x38] sm:%s367] %v390
              $region77: #{tpu_custom_call.1} parent=71 // loop_footer
                %s373 = sadd.s32 1, %s369
              $region78: #{tpu_custom_call.1} parent=71 // loop_footer_branch
                %368 = sbr.rel target = $region74
              $region79: #{tpu_custom_call.1} parent=71 // loop_exit
                _
            $region72: #{tpu_custom_call.1} parent=63 // pred_fallthru
              _
          $region64: #{tpu_custom_call.1} parent=59 // pred_fallthru
            _
          %420 = vnop
        $region60: #{tpu_custom_call.1} parent=47 // pred_fallthru
          _
      $region48: #{tpu_custom_call.1} parent=5 // pred_fallthru
        _
      %p421 = scmp.le.s32.totalorder 1, %s17
      %p422 = scmp.lt.s32.totalorder %s17, 3
      %p423 = pnand %p421, %p422
      %p424 = pneg %p423
      // Predicated region
      $region95: #{tpu_custom_call.1} parent=5 // pred_check
        _
      $region96: #{tpu_custom_call.1} parent=5 // pred_check_branch
        %426 = sbr.rel (%p423) target = $region98
      $region97: #{tpu_custom_call.1} parent=5 // pred_region
        %s427 = ssub.s32 %s17, 1
        %s428 = sand.u32 %s250, 1
        %s429 = sand.u32 %s250, 1
        %s430 = smul.addr %s429, 64
        %s431 = scalar_lea.vmem [#allocation2], %s430
        // Predicated region
        $region99: #{tpu_custom_call.1} parent=97 // pred_check
          %p432 = pneg %p263
        $region100: #{tpu_custom_call.1} parent=97 // pred_check_branch
          %434 = sbr.rel (%p432) target = $region102
        $region101: #{tpu_custom_call.1} parent=97 // pred_region
          _
        $region102: #{tpu_custom_call.1} parent=97 // pred_fallthru
          _
        %p435 = pneg %p38
        %p436 = pneg %p35
        %s437 = smul.u32 4, %s22
        %p438 = scmp.lt.s32.totalorder %s437, 7
        %s439 = scalar_select %p438, %s437, 7
        %s440 = smul.addr %s439, 8
        %s441 = scalar_lea.vmem %s1, %s440
        %p442 = pneg %p64
        %p443 = pneg %p61
        %s444 = smul.u32 4, %s22
        %p445 = scmp.lt.s32.totalorder %s444, 7
        %s446 = scalar_select %p445, %s444, 7
        %s447 = smul.addr %s446, 8
        %s448 = scalar_lea.vmem %s2, %s447
        %p449 = pneg %p90
        %p450 = pneg %p87
        %p451 = pneg %p111
        %p452 = pneg %p108
        %p453 = pneg %p132
        %p454 = pneg %p129
        %p455 = pneg %p153
        %p456 = pneg %p150
        %p457 = pneg %p174
        %p458 = pneg %p171
        %p459 = pneg %p195
        %p460 = pneg %p192
        %p461 = pneg %p216
        %p462 = pneg %p213
        %p463 = pneg %p237
        %p464 = pneg %p234
        %s465 = sand.u32 %s250, 1
        %s466 = sand.u32 %s250, 1
        %s467 = smul.addr %s466, 64
        %s468 = scalar_lea.vmem [#allocation2], %s467
        %p469 = pneg %p263
        %p470 = pneg %p260
        %p471 = pneg %p289
        %p472 = pneg %p286
        %s473 = sand.u32 %s276, 1
        %s474 = sand.u32 %s276, 1
        %s475 = smul.addr %s474, 64
        %s476 = scalar_lea.vmem [#allocation3], %s475
        %s477 = smul.u32 4, %s22
        %p478 = scmp.lt.s32.totalorder %s477, 7
        %s479 = scalar_select %p478, %s477, 7
        %s480 = smul.addr %s479, 8
        %s481 = scalar_lea.vmem %s1, %s480
        %s482 = smul.u32 4, %s22
        %s483 = smul.u32 4, %s22
        %p484 = scmp.lt.s32.totalorder %s483, 7
        %s485 = scalar_select %p484, %s483, 7
        %s486 = smul.addr %s485, 8
        %s487 = scalar_lea.vmem %s2, %s486
        %s488 = smul.u32 4, %s22
        %s489 = smul.u32 4, %s22
        %s490 = smul.u32 4, %s22
        %v491 = vld [vmem:[%s481] sm:$0xff]
        %v492 = vld [vmem:[%s481 + $0x8] sm:$0xff]
        %v493 = vld [vmem:[%s481 + $0x10] sm:$0xff]
        %v494 = vld [vmem:[%s481 + $0x18] sm:$0xff]
        %v495 = vld [vmem:[%s3] sm:$0xff]
        %v496 = vld [vmem:[%s3 + $0x8] sm:$0xff]
        %v497 = vld [vmem:[%s3 + $0x10] sm:$0xff]
        %v498 = vld [vmem:[%s3 + $0x18] sm:$0xff]
        %vm499 = vcmask 261120
        %v501 = vsel %vm499, %v491, 0
        %v504 = vsel %vm499, %v492, 0
        %v507 = vsel %vm499, %v493, 0
        %v510 = vsel %vm499, %v494, 0
        %512 = vmatpush.msra.mxu0 0.0
        %513 = vmatpush.msra.mxu0 0.0
        %514 = vmatpush.msra.mxu0 0.0
        %515 = vmatpush.msra.mxu0 0.0
        %516 = vmatpush.msra.mxu0 0.0
        %517 = vmatpush.msra.mxu0 0.0
        %518 = vmatpush.msra.mxu0 0.0
        %519 = vmatpush.msra.mxu0 0.0
        %520 = vmatpush.msra.mxu0 0.0
        %521 = vmatpush.msra.mxu0 0.0
        %522 = vmatpush.msra.mxu0 0.0
        %523 = vmatpush.msra.mxu0 0.0
        %524 = vmatpush.msra.mxu0 %v498
        %525 = vmatpush.msra.mxu0 %v497
        %526 = vmatpush.msra.mxu0 %v496
        %527 = vmatpush.msra.mxu0 %v495
        %528 = vmatmul.f32.gmra.mxu0 %v501
        %v529 = vpop.f32.mrf.mxu0
        %v530 = vadd.f32 0.0, %v529
        %531 = vmatmul.f32.gmra.mxu0 %v504
        %v532 = vpop.f32.mrf.mxu0
        %v533 = vadd.f32 0.0, %v532
        %534 = vmatmul.f32.gmra.mxu0 %v507
        %v535 = vpop.f32.mrf.mxu0
        %v536 = vadd.f32 0.0, %v535
        %537 = vmatmul.f32.gmra.mxu0 %v510
        %v538 = vpop.f32.mrf.mxu0
        %v539 = vadd.f32 0.0, %v538
        %540 = vdwg.mxu0
        %v541 = vld [vmem:[%s0] sm:$0xf]
        %v542 = vld [vmem:[%s0 + $0x4] sm:$0xf]
        %v543 = vld [vmem:[%s4] sm:$0xff]
        %v544 = vld [vmem:[%s4 + $0x8] sm:$0xff]
        %547 = vst [vmem:[#allocation1] ss:$2 sm:$0xff] %v541
        %s548 = scalar_lea.vmem [#allocation1], 1
        %549 = vst [vmem:[%s548] ss:$2 sm:$0xff] %v542
        %v550 = vld.sshfl [vmem:[#allocation1] sm:$0xff pattern:$0x75316420]
        %vm551 = vcmask 130048
        %v552 = vsel %vm551, %v550, 0
        %554 = vmatpush.msra.mxu0 0.0
        %555 = vmatpush.msra.mxu0 0.0
        %556 = vmatpush.msra.mxu0 0.0
        %557 = vmatpush.msra.mxu0 0.0
        %558 = vmatpush.msra.mxu0 0.0
        %559 = vmatpush.msra.mxu0 0.0
        %560 = vmatpush.msra.mxu0 0.0
        %561 = vmatpush.msra.mxu0 0.0
        %562 = vmatpush.msra.mxu0 0.0
        %563 = vmatpush.msra.mxu0 0.0
        %564 = vmatpush.msra.mxu0 0.0
        %565 = vmatpush.msra.mxu0 0.0
        %566 = vmatpush.msra.mxu0 0.0
        %567 = vmatpush.msra.mxu0 0.0
        %568 = vmatpush.msra.mxu0 %v544
        %569 = vmatpush.msra.mxu0 %v543
        %570 = vmatmul.f32.gmra.mxu0 %v552
        %v571 = vpop.f32.mrf.mxu0
        %v572 = vadd.f32 0.0, %v571
        %573 = vdwg.mxu0
        %v575 = vrot.slane %v572, 4
        %v577 = vld [vmem:[%s487] sm:$0xff]
        %v578 = vld [vmem:[%s487 + $0x8] sm:$0xff]
        %v579 = vld [vmem:[%s487 + $0x10] sm:$0xff]
        %v580 = vld [vmem:[%s487 + $0x18] sm:$0xff]
        %582 = vset.pattern.permute.xlu0 0
        %583 = vperm.xlu0 %582, %v577
        %v584 = vpop.permute.xlu0 %583
        %587 = vset.pattern.permute.xlu0 0
        %588 = vperm.xlu0 %587, %v578
        %v589 = vpop.permute.xlu0 %588
        %592 = vset.pattern.permute.xlu0 0
        %593 = vperm.xlu0 %592, %v579
        %v594 = vpop.permute.xlu0 %593
        %597 = vset.pattern.permute.xlu0 0
        %598 = vperm.xlu0 %597, %v580
        %v599 = vpop.permute.xlu0 %598
        %v601 = vperm.slane %v572, 0
        %v602 = vperm.slane %v575, 0
        %v603 = vmul.f32 %v584, %v601
        %v604 = vmul.f32 %v589, %v601
        %v605 = vmul.f32 %v594, %v601
        %v606 = vmul.f32 %v599, %v601
        %v607 = vmul.f32 %v584, %v602
        %v608 = vmul.f32 %v589, %v602
        %v609 = vmul.f32 %v594, %v602
        %v610 = vmul.f32 %v599, %v602
        %611 = vset.pattern.permute.xlu0 1
        %612 = vperm.xlu0 %611, %v577
        %v613 = vpop.permute.xlu0 %612
        %615 = vset.pattern.permute.xlu0 1
        %616 = vperm.xlu0 %615, %v578
        %v617 = vpop.permute.xlu0 %616
        %619 = vset.pattern.permute.xlu0 1
        %620 = vperm.xlu0 %619, %v579
        %v621 = vpop.permute.xlu0 %620
        %623 = vset.pattern.permute.xlu0 1
        %624 = vperm.xlu0 %623, %v580
        %v625 = vpop.permute.xlu0 %624
        %v627 = vperm.slane %v572, 1
        %v628 = vperm.slane %v575, 1
        %v629 = vmul.f32 %v613, %v627
        %v630 = vmul.f32 %v617, %v627
        %v631 = vmul.f32 %v621, %v627
        %v632 = vmul.f32 %v625, %v627
        %v633 = vmul.f32 %v613, %v628
        %v634 = vmul.f32 %v617, %v628
        %v635 = vmul.f32 %v621, %v628
        %v636 = vmul.f32 %v625, %v628
        %v637 = vadd.f32 %v603, %v629
        %v638 = vadd.f32 %v604, %v630
        %v639 = vadd.f32 %v605, %v631
        %v640 = vadd.f32 %v606, %v632
        %v641 = vadd.f32 %v607, %v633
        %v642 = vadd.f32 %v608, %v634
        %v643 = vadd.f32 %v609, %v635
        %v644 = vadd.f32 %v610, %v636
        %645 = vset.pattern.permute.xlu0 2
        %646 = vperm.xlu0 %645, %v577
        %v647 = vpop.permute.xlu0 %646
        %649 = vset.pattern.permute.xlu0 2
        %650 = vperm.xlu0 %649, %v578
        %v651 = vpop.permute.xlu0 %650
        %653 = vset.pattern.permute.xlu0 2
        %654 = vperm.xlu0 %653, %v579
        %v655 = vpop.permute.xlu0 %654
        %657 = vset.pattern.permute.xlu0 2
        %658 = vperm.xlu0 %657, %v580
        %v659 = vpop.permute.xlu0 %658
        %v661 = vperm.slane %v572, 2
        %v662 = vperm.slane %v575, 2
        %v663 = vmul.f32 %v647, %v661
        %v664 = vmul.f32 %v651, %v661
        %v665 = vmul.f32 %v655, %v661
        %v666 = vmul.f32 %v659, %v661
        %v667 = vmul.f32 %v647, %v662
        %v668 = vmul.f32 %v651, %v662
        %v669 = vmul.f32 %v655, %v662
        %v670 = vmul.f32 %v659, %v662
        %v671 = vadd.f32 %v637, %v663
        %v672 = vadd.f32 %v638, %v664
        %v673 = vadd.f32 %v639, %v665
        %v674 = vadd.f32 %v640, %v666
        %v675 = vadd.f32 %v641, %v667
        %v676 = vadd.f32 %v642, %v668
        %v677 = vadd.f32 %v643, %v669
        %v678 = vadd.f32 %v644, %v670
        %679 = vset.pattern.permute.xlu0 3
        %680 = vperm.xlu0 %679, %v577
        %v681 = vpop.permute.xlu0 %680
        %683 = vset.pattern.permute.xlu0 3
        %684 = vperm.xlu0 %683, %v578
        %v685 = vpop.permute.xlu0 %684
        %687 = vset.pattern.permute.xlu0 3
        %688 = vperm.xlu0 %687, %v579
        %v689 = vpop.permute.xlu0 %688
        %691 = vset.pattern.permute.xlu0 3
        %692 = vperm.xlu0 %691, %v580
        %v693 = vpop.permute.xlu0 %692
        %v695 = vperm.slane %v572, 3
        %v696 = vperm.slane %v575, 3
        %v697 = vmul.f32 %v681, %v695
        %v698 = vmul.f32 %v685, %v695
        %v699 = vmul.f32 %v689, %v695
        %v700 = vmul.f32 %v693, %v695
        %v701 = vmul.f32 %v681, %v696
        %v702 = vmul.f32 %v685, %v696
        %v703 = vmul.f32 %v689, %v696
        %v704 = vmul.f32 %v693, %v696
        %v705 = vadd.f32 %v671, %v697
        %v706 = vadd.f32 %v672, %v698
        %v707 = vadd.f32 %v673, %v699
        %v708 = vadd.f32 %v674, %v700
        %v709 = vadd.f32 %v675, %v701
        %v710 = vadd.f32 %v676, %v702
        %v711 = vadd.f32 %v677, %v703
        %v712 = vadd.f32 %v678, %v704
        %v713 = vadd.f32 %v705, %v530
        %v714 = vadd.f32 %v706, %v533
        %v715 = vadd.f32 %v707, %v536
        %v716 = vadd.f32 %v708, %v539
        %v717 = vadd.f32 %v709, %v530
        %v718 = vadd.f32 %v710, %v533
        %v719 = vadd.f32 %v711, %v536
        %v720 = vadd.f32 %v712, %v539
        %v721 = vld [vmem:[%s5] sm:$0x1]
        %v723 = vperm.slane %v721, 0
        %v725 = vadd.f32 %v713, %v723
        %v726 = vadd.f32 %v714, %v723
        %v727 = vadd.f32 %v715, %v723
        %v728 = vadd.f32 %v716, %v723
        %v729 = vadd.f32 %v717, %v723
        %v730 = vadd.f32 %v718, %v723
        %v731 = vadd.f32 %v719, %v723
        %v732 = vadd.f32 %v720, %v723
        %vm733 = vcmp.gt.f32.partialorder %v725, 0.0
        %vm734 = vcmp.gt.f32.partialorder %v726, 0.0
        %vm735 = vcmp.gt.f32.partialorder %v727, 0.0
        %vm736 = vcmp.gt.f32.partialorder %v728, 0.0
        %vm737 = vcmp.gt.f32.partialorder %v729, 0.0
        %vm738 = vcmp.gt.f32.partialorder %v730, 0.0
        %vm739 = vcmp.gt.f32.partialorder %v731, 0.0
        %vm740 = vcmp.gt.f32.partialorder %v732, 0.0
        %v741 = vmul.f32 %v725, 0.01
        %v742 = vmul.f32 %v726, 0.01
        %v743 = vmul.f32 %v727, 0.01
        %v744 = vmul.f32 %v728, 0.01
        %v745 = vmul.f32 %v729, 0.01
        %v746 = vmul.f32 %v730, 0.01
        %v747 = vmul.f32 %v731, 0.01
        %v748 = vmul.f32 %v732, 0.01
        %v749 = vsel %vm733, %v725, %v741
        %v750 = vsel %vm734, %v726, %v742
        %v751 = vsel %vm735, %v727, %v743
        %v752 = vsel %vm736, %v728, %v744
        %v753 = vsel %vm737, %v729, %v745
        %v754 = vsel %vm738, %v730, %v746
        %v755 = vsel %vm739, %v731, %v747
        %v756 = vsel %vm740, %v732, %v748
        %v757 = vld [vmem:[%s6] sm:$0xff]
        %v758 = vld [vmem:[%s6 + $0x8] sm:$0xff]
        %v759 = vld [vmem:[%s6 + $0x10] sm:$0xff]
        %v760 = vld [vmem:[%s6 + $0x18] sm:$0xff]
        %v761 = vld [vmem:[%s7] sm:$0x1]
        %v763 = vperm.slane %v761, 0
        %v766 = vsel %vm499, %v749, 0
        %v769 = vsel %vm499, %v750, 0
        %v772 = vsel %vm499, %v751, 0
        %v775 = vsel %vm499, %v752, 0
        %v778 = vsel %vm499, %v753, 0
        %v781 = vsel %vm499, %v754, 0
        %v784 = vsel %vm499, %v755, 0
        %v787 = vsel %vm499, %v756, 0
        %789 = vmatpush.msra.mxu0 0.0
        %790 = vmatpush.msra.mxu0 0.0
        %791 = vmatpush.msra.mxu0 0.0
        %792 = vmatpush.msra.mxu0 0.0
        %793 = vmatpush.msra.mxu0 0.0
        %794 = vmatpush.msra.mxu0 0.0
        %795 = vmatpush.msra.mxu0 0.0
        %796 = vmatpush.msra.mxu0 0.0
        %797 = vmatpush.msra.mxu0 0.0
        %798 = vmatpush.msra.mxu0 0.0
        %799 = vmatpush.msra.mxu0 0.0
        %800 = vmatpush.msra.mxu0 0.0
        %801 = vmatpush.msra.mxu0 %v760
        %802 = vmatpush.msra.mxu0 %v759
        %803 = vmatpush.msra.mxu0 %v758
        %804 = vmatpush.msra.mxu0 %v757
        %805 = vmatmul.f32.gmra.mxu0 %v766
        %v806 = vpop.f32.mrf.mxu0
        %v807 = vadd.f32 %v763, %v806
        %808 = vmatmul.f32.gmra.mxu0 %v769
        %v809 = vpop.f32.mrf.mxu0
        %v810 = vadd.f32 %v763, %v809
        %811 = vmatmul.f32.gmra.mxu0 %v772
        %v812 = vpop.f32.mrf.mxu0
        %v813 = vadd.f32 %v763, %v812
        %814 = vmatmul.f32.gmra.mxu0 %v775
        %v815 = vpop.f32.mrf.mxu0
        %v816 = vadd.f32 %v763, %v815
        %817 = vmatmul.f32.gmra.mxu0 %v778
        %v818 = vpop.f32.mrf.mxu0
        %v819 = vadd.f32 %v763, %v818
        %820 = vmatmul.f32.gmra.mxu0 %v781
        %v821 = vpop.f32.mrf.mxu0
        %v822 = vadd.f32 %v763, %v821
        %823 = vmatmul.f32.gmra.mxu0 %v784
        %v824 = vpop.f32.mrf.mxu0
        %v825 = vadd.f32 %v763, %v824
        %826 = vmatmul.f32.gmra.mxu0 %v787
        %v827 = vpop.f32.mrf.mxu0
        %v828 = vadd.f32 %v763, %v827
        %829 = vdwg.mxu0
        %vm830 = vcmp.gt.f32.partialorder %v807, 0.0
        %vm831 = vcmp.gt.f32.partialorder %v810, 0.0
        %vm832 = vcmp.gt.f32.partialorder %v813, 0.0
        %vm833 = vcmp.gt.f32.partialorder %v816, 0.0
        %vm834 = vcmp.gt.f32.partialorder %v819, 0.0
        %vm835 = vcmp.gt.f32.partialorder %v822, 0.0
        %vm836 = vcmp.gt.f32.partialorder %v825, 0.0
        %vm837 = vcmp.gt.f32.partialorder %v828, 0.0
        %v838 = vmul.f32 %v807, 0.01
        %v839 = vmul.f32 %v810, 0.01
        %v840 = vmul.f32 %v813, 0.01
        %v841 = vmul.f32 %v816, 0.01
        %v842 = vmul.f32 %v819, 0.01
        %v843 = vmul.f32 %v822, 0.01
        %v844 = vmul.f32 %v825, 0.01
        %v845 = vmul.f32 %v828, 0.01
        %v846 = vsel %vm830, %v807, %v838
        %v847 = vsel %vm831, %v810, %v839
        %v848 = vsel %vm832, %v813, %v840
        %v849 = vsel %vm833, %v816, %v841
        %v850 = vsel %vm834, %v819, %v842
        %v851 = vsel %vm835, %v822, %v843
        %v852 = vsel %vm836, %v825, %v844
        %v853 = vsel %vm837, %v828, %v845
        %v854 = vld [vmem:[%s8] sm:$0xff]
        %v855 = vld [vmem:[%s8 + $0x8] sm:$0xff]
        %v856 = vld [vmem:[%s8 + $0x10] sm:$0xff]
        %v857 = vld [vmem:[%s8 + $0x18] sm:$0xff]
        %v858 = vld [vmem:[%s9] sm:$0x1]
        %v860 = vperm.slane %v858, 0
        %v863 = vsel %vm499, %v846, 0
        %v866 = vsel %vm499, %v847, 0
        %v869 = vsel %vm499, %v848, 0
        %v872 = vsel %vm499, %v849, 0
        %v875 = vsel %vm499, %v850, 0
        %v878 = vsel %vm499, %v851, 0
        %v881 = vsel %vm499, %v852, 0
        %v884 = vsel %vm499, %v853, 0
        %886 = vmatpush.msra.mxu0 0.0
        %887 = vmatpush.msra.mxu0 0.0
        %888 = vmatpush.msra.mxu0 0.0
        %889 = vmatpush.msra.mxu0 0.0
        %890 = vmatpush.msra.mxu0 0.0
        %891 = vmatpush.msra.mxu0 0.0
        %892 = vmatpush.msra.mxu0 0.0
        %893 = vmatpush.msra.mxu0 0.0
        %894 = vmatpush.msra.mxu0 0.0
        %895 = vmatpush.msra.mxu0 0.0
        %896 = vmatpush.msra.mxu0 0.0
        %897 = vmatpush.msra.mxu0 0.0
        %898 = vmatpush.msra.mxu0 %v857
        %899 = vmatpush.msra.mxu0 %v856
        %900 = vmatpush.msra.mxu0 %v855
        %901 = vmatpush.msra.mxu0 %v854
        %902 = vmatmul.f32.gmra.mxu0 %v863
        %v903 = vpop.f32.mrf.mxu0
        %v904 = vadd.f32 %v860, %v903
        %905 = vmatmul.f32.gmra.mxu0 %v866
        %v906 = vpop.f32.mrf.mxu0
        %v907 = vadd.f32 %v860, %v906
        %908 = vmatmul.f32.gmra.mxu0 %v869
        %v909 = vpop.f32.mrf.mxu0
        %v910 = vadd.f32 %v860, %v909
        %911 = vmatmul.f32.gmra.mxu0 %v872
        %v912 = vpop.f32.mrf.mxu0
        %v913 = vadd.f32 %v860, %v912
        %914 = vmatmul.f32.gmra.mxu0 %v875
        %v915 = vpop.f32.mrf.mxu0
        %v916 = vadd.f32 %v860, %v915
        %917 = vmatmul.f32.gmra.mxu0 %v878
        %v918 = vpop.f32.mrf.mxu0
        %v919 = vadd.f32 %v860, %v918
        %920 = vmatmul.f32.gmra.mxu0 %v881
        %v921 = vpop.f32.mrf.mxu0
        %v922 = vadd.f32 %v860, %v921
        %923 = vmatmul.f32.gmra.mxu0 %v884
        %v924 = vpop.f32.mrf.mxu0
        %v925 = vadd.f32 %v860, %v924
        %926 = vdwg.mxu0
        %v927 = vmul.f32 %v904, 1.442695
        %v928 = vpow.pop %v927
        %v929 = vmul.f32 %v907, 1.442695
        %v930 = vpow.pop %v929
        %v931 = vmul.f32 %v910, 1.442695
        %v932 = vpow.pop %v931
        %v933 = vmul.f32 %v913, 1.442695
        %v934 = vpow.pop %v933
        %v935 = vmul.f32 %v916, 1.442695
        %v936 = vpow.pop %v935
        %v937 = vmul.f32 %v919, 1.442695
        %v938 = vpow.pop %v937
        %v939 = vmul.f32 %v922, 1.442695
        %v940 = vpow.pop %v939
        %v941 = vmul.f32 %v925, 1.442695
        %v942 = vpow.pop %v941
        %v943 = vadd.f32 %v928, 0.0001
        %v944 = vadd.f32 %v930, 0.0001
        %v945 = vadd.f32 %v932, 0.0001
        %v946 = vadd.f32 %v934, 0.0001
        %v947 = vadd.f32 %v936, 0.0001
        %v948 = vadd.f32 %v938, 0.0001
        %v949 = vadd.f32 %v940, 0.0001
        %v950 = vadd.f32 %v942, 0.0001
        %v951 = vrsqrt.pop %v943
        %v952 = vmul.f32 %v951, %v943
        %v953 = vmul.f32 %v952, %v951
        %v954 = vmul.f32 0.5, %v953
        %v955 = vsub.f32 1.5, %v954
        %v956 = vmul.f32 %v951, %v955
        %v957 = vmul.f32 %v943, %v956
        %vm958 = vcmp.eq.f32.partialorder %v943, inf
        %v959 = vsel %vm958, %v943, %v957
        %vm960 = vcmp.eq.f32.partialorder %v943, 0.0
        %v961 = vand.u32 %v943, 2147483648
        %v962 = vsel %vm960, %v961, %v959
        %v963 = vrsqrt.pop %v944
        %v964 = vmul.f32 %v963, %v944
        %v965 = vmul.f32 %v964, %v963
        %v966 = vmul.f32 0.5, %v965
        %v967 = vsub.f32 1.5, %v966
        %v968 = vmul.f32 %v963, %v967
        %v969 = vmul.f32 %v944, %v968
        %vm970 = vcmp.eq.f32.partialorder %v944, inf
        %v971 = vsel %vm970, %v944, %v969
        %vm972 = vcmp.eq.f32.partialorder %v944, 0.0
        %v973 = vand.u32 %v944, 2147483648
        %v974 = vsel %vm972, %v973, %v971
        %v975 = vrsqrt.pop %v945
        %v976 = vmul.f32 %v975, %v945
        %v977 = vmul.f32 %v976, %v975
        %v978 = vmul.f32 0.5, %v977
        %v979 = vsub.f32 1.5, %v978
        %v980 = vmul.f32 %v975, %v979
        %v981 = vmul.f32 %v945, %v980
        %vm982 = vcmp.eq.f32.partialorder %v945, inf
        %v983 = vsel %vm982, %v945, %v981
        %vm984 = vcmp.eq.f32.partialorder %v945, 0.0
        %v985 = vand.u32 %v945, 2147483648
        %v986 = vsel %vm984, %v985, %v983
        %v987 = vrsqrt.pop %v946
        %v988 = vmul.f32 %v987, %v946
        %v989 = vmul.f32 %v988, %v987
        %v990 = vmul.f32 0.5, %v989
        %v991 = vsub.f32 1.5, %v990
        %v992 = vmul.f32 %v987, %v991
        %v993 = vmul.f32 %v946, %v992
        %vm994 = vcmp.eq.f32.partialorder %v946, inf
        %v995 = vsel %vm994, %v946, %v993
        %vm996 = vcmp.eq.f32.partialorder %v946, 0.0
        %v997 = vand.u32 %v946, 2147483648
        %v998 = vsel %vm996, %v997, %v995
        %v999 = vrsqrt.pop %v947
        %v1000 = vmul.f32 %v999, %v947
        %v1001 = vmul.f32 %v1000, %v999
        %v1002 = vmul.f32 0.5, %v1001
        %v1003 = vsub.f32 1.5, %v1002
        %v1004 = vmul.f32 %v999, %v1003
        %v1005 = vmul.f32 %v947, %v1004
        %vm1006 = vcmp.eq.f32.partialorder %v947, inf
        %v1007 = vsel %vm1006, %v947, %v1005
        %vm1008 = vcmp.eq.f32.partialorder %v947, 0.0
        %v1009 = vand.u32 %v947, 2147483648
        %v1010 = vsel %vm1008, %v1009, %v1007
        %v1011 = vrsqrt.pop %v948
        %v1012 = vmul.f32 %v1011, %v948
        %v1013 = vmul.f32 %v1012, %v1011
        %v1014 = vmul.f32 0.5, %v1013
        %v1015 = vsub.f32 1.5, %v1014
        %v1016 = vmul.f32 %v1011, %v1015
        %v1017 = vmul.f32 %v948, %v1016
        %vm1018 = vcmp.eq.f32.partialorder %v948, inf
        %v1019 = vsel %vm1018, %v948, %v1017
        %vm1020 = vcmp.eq.f32.partialorder %v948, 0.0
        %v1021 = vand.u32 %v948, 2147483648
        %v1022 = vsel %vm1020, %v1021, %v1019
        %v1023 = vrsqrt.pop %v949
        %v1024 = vmul.f32 %v1023, %v949
        %v1025 = vmul.f32 %v1024, %v1023
        %v1026 = vmul.f32 0.5, %v1025
        %v1027 = vsub.f32 1.5, %v1026
        %v1028 = vmul.f32 %v1023, %v1027
        %v1029 = vmul.f32 %v949, %v1028
        %vm1030 = vcmp.eq.f32.partialorder %v949, inf
        %v1031 = vsel %vm1030, %v949, %v1029
        %vm1032 = vcmp.eq.f32.partialorder %v949, 0.0
        %v1033 = vand.u32 %v949, 2147483648
        %v1034 = vsel %vm1032, %v1033, %v1031
        %v1035 = vrsqrt.pop %v950
        %v1036 = vmul.f32 %v1035, %v950
        %v1037 = vmul.f32 %v1036, %v1035
        %v1038 = vmul.f32 0.5, %v1037
        %v1039 = vsub.f32 1.5, %v1038
        %v1040 = vmul.f32 %v1035, %v1039
        %v1041 = vmul.f32 %v950, %v1040
        %vm1042 = vcmp.eq.f32.partialorder %v950, inf
        %v1043 = vsel %vm1042, %v950, %v1041
        %vm1044 = vcmp.eq.f32.partialorder %v950, 0.0
        %v1045 = vand.u32 %v950, 2147483648
        %v1046 = vsel %vm1044, %v1045, %v1043
        %v1047 = vld [vmem:[%s431] sm:$0xff]
        %v1048 = vld [vmem:[%s431 + $0x8] sm:$0xff]
        %v1049 = vld [vmem:[%s431 + $0x10] sm:$0xff]
        %v1050 = vld [vmem:[%s431 + $0x18] sm:$0xff]
        %v1051 = vld [vmem:[%s431 + $0x20] sm:$0xff]
        %v1052 = vld [vmem:[%s431 + $0x28] sm:$0xff]
        %v1053 = vld [vmem:[%s431 + $0x30] sm:$0xff]
        %v1054 = vld [vmem:[%s431 + $0x38] sm:$0xff]
        %1063 = vrot.lane.b32.xlu0 %v1047, 16
        %v1064 = vpop.permute.xlu0 %1063
        %1065 = vrot.lane.b32.xlu0 %v1048, 16
        %v1066 = vpop.permute.xlu0 %1065
        %1067 = vrot.lane.b32.xlu0 %v1049, 16
        %v1068 = vpop.permute.xlu0 %1067
        %1069 = vrot.lane.b32.xlu0 %v1050, 16
        %v1070 = vpop.permute.xlu0 %1069
        %1071 = vrot.lane.b32.xlu0 %v1051, 16
        %v1072 = vpop.permute.xlu0 %1071
        %1073 = vrot.lane.b32.xlu0 %v1052, 16
        %v1074 = vpop.permute.xlu0 %1073
        %1075 = vrot.lane.b32.xlu0 %v1053, 16
        %v1076 = vpop.permute.xlu0 %1075
        %1077 = vrot.lane.b32.xlu0 %v1054, 16
        %v1078 = vpop.permute.xlu0 %1077
        %v1087 = vmul.f32 %v962, %v1064
        %v1088 = vmul.f32 %v974, %v1066
        %v1089 = vmul.f32 %v986, %v1068
        %v1090 = vmul.f32 %v998, %v1070
        %v1091 = vmul.f32 %v1010, %v1072
        %v1092 = vmul.f32 %v1022, %v1074
        %v1093 = vmul.f32 %v1034, %v1076
        %v1094 = vmul.f32 %v1046, %v1078
        %1103 = vrot.lane.b32.xlu0 %v1087, 112
        %v1104 = vpop.permute.xlu0 %1103
        %1105 = vrot.lane.b32.xlu0 %v1088, 112
        %v1106 = vpop.permute.xlu0 %1105
        %1107 = vrot.lane.b32.xlu0 %v1089, 112
        %v1108 = vpop.permute.xlu0 %1107
        %1109 = vrot.lane.b32.xlu0 %v1090, 112
        %v1110 = vpop.permute.xlu0 %1109
        %1111 = vrot.lane.b32.xlu0 %v1091, 112
        %v1112 = vpop.permute.xlu0 %1111
        %1113 = vrot.lane.b32.xlu0 %v1092, 112
        %v1114 = vpop.permute.xlu0 %1113
        %1115 = vrot.lane.b32.xlu0 %v1093, 112
        %v1116 = vpop.permute.xlu0 %1115
        %1117 = vrot.lane.b32.xlu0 %v1094, 112
        %v1118 = vpop.permute.xlu0 %1117
        %v1127 = vadd.f32 %v904, %v1104
        %v1128 = vadd.f32 %v907, %v1106
        %v1129 = vadd.f32 %v910, %v1108
        %v1130 = vadd.f32 %v913, %v1110
        %v1131 = vadd.f32 %v916, %v1112
        %v1132 = vadd.f32 %v919, %v1114
        %v1133 = vadd.f32 %v922, %v1116
        %v1134 = vadd.f32 %v925, %v1118
        %1143 = vrot.lane.b32.xlu0 %v1127, 32
        %v1144 = vpop.permute.xlu0 %1143
        %1145 = vrot.lane.b32.xlu0 %v1128, 32
        %v1146 = vpop.permute.xlu0 %1145
        %1147 = vrot.lane.b32.xlu0 %v1129, 32
        %v1148 = vpop.permute.xlu0 %1147
        %1149 = vrot.lane.b32.xlu0 %v1130, 32
        %v1150 = vpop.permute.xlu0 %1149
        %1151 = vrot.lane.b32.xlu0 %v1131, 32
        %v1152 = vpop.permute.xlu0 %1151
        %1153 = vrot.lane.b32.xlu0 %v1132, 32
        %v1154 = vpop.permute.xlu0 %1153
        %1155 = vrot.lane.b32.xlu0 %v1133, 32
        %v1156 = vpop.permute.xlu0 %1155
        %1157 = vrot.lane.b32.xlu0 %v1134, 32
        %v1158 = vpop.permute.xlu0 %1157
        %v1167 = vsel %vm551, %v904, %v962
        %v1168 = vsel %vm551, %v907, %v974
        %v1169 = vsel %vm551, %v910, %v986
        %v1170 = vsel %vm551, %v913, %v998
        %v1171 = vsel %vm551, %v916, %v1010
        %v1172 = vsel %vm551, %v919, %v1022
        %v1173 = vsel %vm551, %v922, %v1034
        %v1174 = vsel %vm551, %v925, %v1046
        %v1175 = vsel %vm499, %v1167, %v1144
        %v1176 = vsel %vm499, %v1168, %v1146
        %v1177 = vsel %vm499, %v1169, %v1148
        %v1178 = vsel %vm499, %v1170, %v1150
        %v1179 = vsel %vm499, %v1171, %v1152
        %v1180 = vsel %vm499, %v1172, %v1154
        %v1181 = vsel %vm499, %v1173, %v1156
        %v1182 = vsel %vm499, %v1174, %v1158
        %vm1183 = vcmask 392192
        %1184 = vst.msk [vmem:[%s476] sm:$0xff] %vm1183, %v1175
        %1185 = vst.msk [vmem:[%s476 + $0x8] sm:$0xff] %vm1183, %v1176
        %1186 = vst.msk [vmem:[%s476 + $0x10] sm:$0xff] %vm1183, %v1177
        %1187 = vst.msk [vmem:[%s476 + $0x18] sm:$0xff] %vm1183, %v1178
        %1188 = vst.msk [vmem:[%s476 + $0x20] sm:$0xff] %vm1183, %v1179
        %1189 = vst.msk [vmem:[%s476 + $0x28] sm:$0xff] %vm1183, %v1180
        %1190 = vst.msk [vmem:[%s476 + $0x30] sm:$0xff] %vm1183, %v1181
        %1191 = vst.msk [vmem:[%s476 + $0x38] sm:$0xff] %vm1183, %v1182
        %s1192 = sand.u32 %s276, 1
        %s1193 = sand.u32 %s276, 1
        %s1194 = smul.addr %s1193, 64
        %s1195 = scalar_lea.vmem [#allocation3], %s1194
        // Predicated region
        $region103: #{tpu_custom_call.1} parent=97 // pred_check
          %p1196 = pneg %p286
        $region104: #{tpu_custom_call.1} parent=97 // pred_check_branch
          %1198 = sbr.rel (%p1196) target = $region106
        $region105: #{tpu_custom_call.1} parent=97 // pred_region
          %s1199 = smul.u32 4, %s22
          %s1200 = smul.addr %s1199, 8
          %s1201 = scalar_lea.vmem %s11, %s1200
          // Predicated region
          $region107: #{tpu_custom_call.1} parent=105 // pred_check
            _
          $region108: #{tpu_custom_call.1} parent=105 // pred_check_branch
            %1203 = sbr.rel (0) target = $region110
          $region109: #{tpu_custom_call.1} parent=105 // pred_region
            // Predicated region
            $region111: #{tpu_custom_call.1} parent=109 // pred_check
              _
            $region112: #{tpu_custom_call.1} parent=109 // pred_check_branch
              %1205 = sbr.rel (0) target = $region114
            $region113: #{tpu_custom_call.1} parent=109 // pred_region
              // Predicated region
              $region126: #{tpu_custom_call.1} parent=113 // pred_check
                _
              $region127: #{tpu_custom_call.1} parent=113 // pred_check_branch
                %1235 = sbr.rel (0) target = $region129
              $region128: #{tpu_custom_call.1} parent=113 // pred_region
                loop: start=0, step=1, limit=1
                $region130: #{tpu_custom_call.1} parent=128 // loop_pre_header
                  _
                $region131: #{tpu_custom_call.1} parent=128 // loop_header
                  %s1237 = sphi 0, %s1241
                  %p1238 = scmp.ge.s32.totalorder %s1237, 1
                  %s1242 = sphi %s1195, %s1195
                  %s1243 = sphi %s1201, %s1201
                $region132: #{tpu_custom_call.1} parent=128 // loop_header_branch
                  %1240 = sbr.rel (%p1238) target = $region136
                $region133: #{tpu_custom_call.1} parent=128 // loop_body
                  %v1244 = vld [vmem:[%s1242] sm:$0xff]
                  %1245 = vst [vmem:[%s1243] sm:$0xff] %v1244
                  %v1246 = vld [vmem:[%s1242 + $0x8] sm:$0xff]
                  %1247 = vst [vmem:[%s1243 + $0x8] sm:$0xff] %v1246
                  %v1248 = vld [vmem:[%s1242 + $0x10] sm:$0xff]
                  %1249 = vst [vmem:[%s1243 + $0x10] sm:$0xff] %v1248
                  %v1250 = vld [vmem:[%s1242 + $0x18] sm:$0xff]
                  %1251 = vst [vmem:[%s1243 + $0x18] sm:$0xff] %v1250
                  %v1252 = vld [vmem:[%s1242 + $0x20] sm:$0xff]
                  %1253 = vst [vmem:[%s1243 + $0x40] sm:$0xff] %v1252
                  %v1254 = vld [vmem:[%s1242 + $0x28] sm:$0xff]
                  %1255 = vst [vmem:[%s1243 + $0x48] sm:$0xff] %v1254
                  %v1256 = vld [vmem:[%s1242 + $0x30] sm:$0xff]
                  %1257 = vst [vmem:[%s1243 + $0x50] sm:$0xff] %v1256
                  %v1258 = vld [vmem:[%s1242 + $0x38] sm:$0xff]
                  %1259 = vst [vmem:[%s1243 + $0x58] sm:$0xff] %v1258
                $region134: #{tpu_custom_call.1} parent=128 // loop_footer
                  %s1241 = sadd.s32 1, %s1237
                $region135: #{tpu_custom_call.1} parent=128 // loop_footer_branch
                  %1236 = sbr.rel target = $region131
                $region136: #{tpu_custom_call.1} parent=128 // loop_exit
                  _
              $region129: #{tpu_custom_call.1} parent=113 // pred_fallthru
                _
              // Predicated region
              $region137: #{tpu_custom_call.1} parent=113 // pred_check
                _
              $region138: #{tpu_custom_call.1} parent=113 // pred_check_branch
                %1261 = sbr.rel target = $region140
              $region139: #{tpu_custom_call.1} parent=113 // pred_region
                _
              $region140: #{tpu_custom_call.1} parent=113 // pred_fallthru
                _
            $region114: #{tpu_custom_call.1} parent=109 // pred_fallthru
              _
            // Predicated region
            $region115: #{tpu_custom_call.1} parent=109 // pred_check
              _
            $region116: #{tpu_custom_call.1} parent=109 // pred_check_branch
              %1207 = sbr.rel target = $region118
            $region117: #{tpu_custom_call.1} parent=109 // pred_region
              %s1209 = ssub.s32 256, 1
              loop: start=0, step=1, limit=1
              $region119: #{tpu_custom_call.1} parent=117 // loop_pre_header
                _
              $region120: #{tpu_custom_call.1} parent=117 // loop_header
                %s1211 = sphi 0, %s1215
                %p1212 = scmp.ge.s32.totalorder %s1211, 1
                %s1216 = sphi %s1195, %s1195
                %s1217 = sphi %s1201, %s1201
              $region121: #{tpu_custom_call.1} parent=117 // loop_header_branch
                %1214 = sbr.rel (%p1212) target = $region125
              $region122: #{tpu_custom_call.1} parent=117 // loop_body
                %v1218 = vld [vmem:[%s1216] sm:%s1209]
                %1219 = vst [vmem:[%s1217] sm:%s1209] %v1218
                %v1220 = vld [vmem:[%s1216 + $0x8] sm:%s1209]
                %1221 = vst [vmem:[%s1217 + $0x8] sm:%s1209] %v1220
                %v1222 = vld [vmem:[%s1216 + $0x10] sm:%s1209]
                %1223 = vst [vmem:[%s1217 + $0x10] sm:%s1209] %v1222
                %v1224 = vld [vmem:[%s1216 + $0x18] sm:%s1209]
                %1225 = vst [vmem:[%s1217 + $0x18] sm:%s1209] %v1224
                %v1226 = vld [vmem:[%s1216 + $0x20] sm:%s1209]
                %1227 = vst [vmem:[%s1217 + $0x40] sm:%s1209] %v1226
                %v1228 = vld [vmem:[%s1216 + $0x28] sm:%s1209]
                %1229 = vst [vmem:[%s1217 + $0x48] sm:%s1209] %v1228
                %v1230 = vld [vmem:[%s1216 + $0x30] sm:%s1209]
                %1231 = vst [vmem:[%s1217 + $0x50] sm:%s1209] %v1230
                %v1232 = vld [vmem:[%s1216 + $0x38] sm:%s1209]
                %1233 = vst [vmem:[%s1217 + $0x58] sm:%s1209] %v1232
              $region123: #{tpu_custom_call.1} parent=117 // loop_footer
                %s1215 = sadd.s32 1, %s1211
              $region124: #{tpu_custom_call.1} parent=117 // loop_footer_branch
                %1210 = sbr.rel target = $region120
              $region125: #{tpu_custom_call.1} parent=117 // loop_exit
                _
            $region118: #{tpu_custom_call.1} parent=109 // pred_fallthru
              _
          $region110: #{tpu_custom_call.1} parent=105 // pred_fallthru
            _
          %1262 = vnop
        $region106: #{tpu_custom_call.1} parent=97 // pred_fallthru
          _
      $region98: #{tpu_custom_call.1} parent=5 // pred_fallthru
        _
      %p1263 = scmp.le.s32.totalorder 2, %s17
      // Predicated region
      $region141: #{tpu_custom_call.1} parent=5 // pred_check
        %p1264 = pneg %p1263
      $region142: #{tpu_custom_call.1} parent=5 // pred_check_branch
        %1266 = sbr.rel (%p1264) target = $region144
      $region143: #{tpu_custom_call.1} parent=5 // pred_region
        %s1267 = ssub.s32 %s17, 2
        // Predicated region
        $region145: #{tpu_custom_call.1} parent=143 // pred_check
          %p1268 = pneg %p292
        $region146: #{tpu_custom_call.1} parent=143 // pred_check_branch
          %1270 = sbr.rel (%p1268) target = $region148
        $region147: #{tpu_custom_call.1} parent=143 // pred_region
          %s1271 = sand.u32 %s277, 1
          %s1272 = sand.u32 %s277, 1
          %s1273 = smul.addr %s1272, 64
          %s1274 = scalar_lea.vmem [#allocation3], %s1273
        $region148: #{tpu_custom_call.1} parent=143 // pred_fallthru
          _
      $region144: #{tpu_custom_call.1} parent=5 // pred_fallthru
        _
    $region6: #{tpu_custom_call.1} parent=1 // loop_footer
      %s21 = sadd.s32 1, %s17
    $region7: #{tpu_custom_call.1} parent=1 // loop_footer_branch
      %16 = sbr.rel target = $region3
    $region8: #{tpu_custom_call.1} parent=1 // loop_exit
      _

</llo_original>
